<compile_context>
chip_gen: v5e
topology: v5e:2x2
jax: 0.10.0
libtpu: 0.0.40
codegen_flags: <defaults>
</compile_context>

<pallas_src>
import jax
import jax.numpy as jnp
from jax.experimental import pallas as pl
from jax.experimental.pallas import tpu as pltpu

# ---- model sizes (from the PyTorch module) ---------------------------------
LATENT_SIZE = 2
HIDDEN_SIZE_2 = 169
HIDDEN_SIZE_1 = 400
INPUT_SIZE = 784          # decoder output dim == autoencoder input_size

BATCH = 8


def _round_up(x, m):
    return ((x + m - 1) // m) * m


# ---- padded sizes (tight: only what alignment actually needs) ---------------
W1_ROWS = 8                               # rows 0,1 = W1, row 2 = b1 (+1.0 col)
H2_P = _round_up(HIDDEN_SIZE_2, 16)       # 176: 16-aligned for bf16 sublane tiling
H1_P = HIDDEN_SIZE_1                      # 400: already 8/16 aligned
OUT_P = INPUT_SIZE                        # 784: full-array block, no padding


# =============================================================================
# Pallas kernel: fused Linear->ReLU->Linear->ReLU->Linear (5 operands)
# =============================================================================
def decoder2_kernel(x_ref, w1_ref, w2_ref, w3_ref, b3_ref, o_ref):
    x = x_ref[...]                        # [B, 2] f32
    w1 = w1_ref[...]                      # [8, H2_P] f32

    # Layer 1: K=2 -> VPU outer product; row 2 of w1 is the folded bias row
    # (b1 | 1.0 | 0...).  Columns >= 169 of rows 0..1 are zero, so after ReLU:
    #   h1[:, :169] = relu(x @ W1 + b1),  h1[:, 169] = 1.0,  h1[:, 170:] = 0.
    h1 = x[:, 0:1] * w1[0:1, :] + x[:, 1:2] * w1[1:2, :] + w1[2:3, :]
    h1 = jnp.maximum(h1, 0.0)             # [B, H2_P] f32

    # Layer 2: bf16 MXU, f32 accumulation.  Row 169 of w2 holds b2 and is
    # picked up by the 1.0 column of h1; rows 170..175 are zero padding.
    h2 = jnp.dot(h1.astype(jnp.bfloat16), w2_ref[...],
                 preferred_element_type=jnp.float32)
    h2 = jnp.maximum(h2, 0.0)             # [B, H1_P] f32

    # Layer 3: bf16 MXU, f32 accumulation; b3 added in f32.
    out = jnp.dot(h2.astype(jnp.bfloat16), w3_ref[...],
                  preferred_element_type=jnp.float32)
    o_ref[...] = (out + b3_ref[...]).astype(o_ref.dtype)      # [B, INPUT_SIZE]


# =============================================================================
# One-time parameter preparation (pad + bias folding + dtype).
# Weights come in as [in, out] f32 (transposed vs nn.Linear's [out, in]).
# NOT in the per-call path.
# =============================================================================
def prepare_params(w1, b1, w2, b2, w3, b3):
    w1_p = jnp.zeros((W1_ROWS, H2_P), jnp.float32)
    w1_p = w1_p.at[:LATENT_SIZE, :HIDDEN_SIZE_2].set(w1)
    w1_p = w1_p.at[2, :HIDDEN_SIZE_2].set(b1)        # folded b1 (stays f32)
    w1_p = w1_p.at[2, HIDDEN_SIZE_2].set(1.0)        # "1" feeding the b2 row of w2

    w2_p = jnp.zeros((H2_P, H1_P), jnp.float32)
    w2_p = w2_p.at[:HIDDEN_SIZE_2, :].set(w2)
    w2_p = w2_p.at[HIDDEN_SIZE_2, :].set(b2)         # folded b2 (lands in a pad row)
    w2_p = w2_p.astype(jnp.bfloat16)

    w3_p = w3.astype(jnp.bfloat16)                   # [400, 784], no padding
    b3_p = b3.reshape(1, OUT_P).astype(jnp.float32)
    return (w1_p, w2_p, w3_p, b3_p)


# =============================================================================
# Per-call wrapper: x goes straight in (no pad), one pallas_call, no slicing.
# =============================================================================
@jax.jit
def decoder2_forward(x, params):
    w1_p, w2_p, w3_p, b3_p = params
    B = x.shape[0]

    operands = (x, w1_p, w2_p, w3_p, b3_p)
    flops = 2 * B * (LATENT_SIZE * HIDDEN_SIZE_2
                     + HIDDEN_SIZE_2 * HIDDEN_SIZE_1
                     + HIDDEN_SIZE_1 * INPUT_SIZE)
    bytes_accessed = (sum(a.size * a.dtype.itemsize for a in operands)
                      + B * INPUT_SIZE * 4)

    vmem = pl.BlockSpec(memory_space=pltpu.MemorySpace.VMEM)
    return pl.pallas_call(
        decoder2_kernel,
        out_shape=jax.ShapeDtypeStruct((B, INPUT_SIZE), jnp.float32),
        in_specs=[vmem] * 5,
        out_specs=vmem,
        cost_estimate=pl.CostEstimate(flops=flops, transcendentals=0,
                                      bytes_accessed=bytes_accessed),
    )(*operands)


# =============================================================================
# Deterministic init (mimics nn.Linear's U(-1/sqrt(fan_in), +1/sqrt(fan_in)))
# =============================================================================
def init_params(key):
    def linear(key, fan_in, fan_out):
        kw, kb = jax.random.split(key)
        bound = 1.0 / jnp.sqrt(jnp.float32(fan_in))
        w = jax.random.uniform(kw, (fan_in, fan_out), jnp.float32, -bound, bound)
        b = jax.random.uniform(kb, (fan_out,), jnp.float32, -bound, bound)
        return w, b

    k1, k2, k3 = jax.random.split(key, 3)
    w1, b1 = linear(k1, LATENT_SIZE,   HIDDEN_SIZE_2)
    w2, b2 = linear(k2, HIDDEN_SIZE_2, HIDDEN_SIZE_1)
    w3, b3 = linear(k3, HIDDEN_SIZE_1, INPUT_SIZE)
    return w1, b1, w2, b2, w3, b3


# ---- references -------------------------------------------------------------
def reference_mirror(x, params):
    """Plain-JAX mirror of the kernel numerics (bf16 matmul inputs, f32 acc)."""
    w1_p, w2_p, w3_p, b3_p = params
    h1 = jnp.maximum(x[:, 0:1] * w1_p[0:1, :] + x[:, 1:2] * w1_p[1:2, :]
                     + w1_p[2:3, :], 0.0)
    h2 = jnp.maximum(
        jnp.dot(h1.astype(jnp.bfloat16), w2_p,
                preferred_element_type=jnp.float32), 0.0)
    return jnp.dot(h2.astype(jnp.bfloat16), w3_p,
                   preferred_element_type=jnp.float32) + b3_p


def reference_f32(x, raw_params):
    """Full-precision reference matching the original PyTorch module."""
    w1, b1, w2, b2, w3, b3 = raw_params
    h1 = jnp.maximum(x @ w1 + b1, 0.0)
    h2 = jnp.maximum(h1 @ w2 + b2, 0.0)
    return h2 @ w3 + b3


if __name__ == "__main__":
    key = jax.random.PRNGKey(0)
    kx, kp = jax.random.split(key)

    x = jax.random.normal(kx, (BATCH, LATENT_SIZE), jnp.float32)
    raw_params = init_params(kp)
    params = prepare_params(*raw_params)     # one-time prep, not per call

    out = jax.block_until_ready(decoder2_forward(x, params))
    assert out.shape == (BATCH, INPUT_SIZE), out.shape

    # Tight check vs a plain-JAX mirror of the kernel's exact numerics.
    ref_m = reference_mirror(x, params)
    assert jnp.allclose(out, ref_m, atol=1e-2, rtol=1e-2), "mismatch vs kernel-numerics ref"

    # Looser parity check vs the original f32 (PyTorch-equivalent) model: the
    # only deliberate deviation is bf16 weight rounding with f32 accumulation.
    ref_f = reference_f32(x, raw_params)
    assert jnp.allclose(out, ref_f, atol=5e-2, rtol=5e-2), "mismatch vs f32 reference"

    print("KERNEL_OK")
</pallas_src>

<mosaic_0001>
module attributes {stable_mosaic.version = 11 : i64} {
  func.func @decoder2_kernel(%arg0: memref<8x2xf32, #tpu.memory_space<vmem>>, %arg1: memref<8x176xf32, #tpu.memory_space<vmem>>, %arg2: memref<176x400xbf16, #tpu.memory_space<vmem>>, %arg3: memref<400x784xbf16, #tpu.memory_space<vmem>>, %arg4: memref<1x784xf32, #tpu.memory_space<vmem>>, %arg5: memref<8x784xf32, #tpu.memory_space<vmem>>) attributes {dimension_semantics = [], scalar_prefetch = 0 : i64, scratch_operands = 0 : i64, tpu.core_type = #tpu.core_type<tc>} {
    %c0 = arith.constant 0 : index
    %c0_0 = arith.constant 0 : index
    %0 = vector.load %arg0[%c0, %c0_0] : memref<8x2xf32, #tpu.memory_space<vmem>>, vector<8x2xf32>
    %c0_1 = arith.constant 0 : index
    %c0_2 = arith.constant 0 : index
    %1 = vector.load %arg1[%c0_1, %c0_2] : memref<8x176xf32, #tpu.memory_space<vmem>>, vector<8x176xf32>
    %2 = vector.extract_strided_slice %0 {offsets = [0, 0], sizes = [8, 1], strides = [1, 1]} : vector<8x2xf32> to vector<8x1xf32>
    %3 = vector.extract_strided_slice %1 {offsets = [0, 0], sizes = [1, 176], strides = [1, 1]} : vector<8x176xf32> to vector<1x176xf32>
    %4 = vector.broadcast %2 : vector<8x1xf32> to vector<8x176xf32>
    %5 = vector.broadcast %3 : vector<1x176xf32> to vector<8x176xf32>
    %6 = arith.mulf %4, %5 : vector<8x176xf32>
    %7 = vector.extract_strided_slice %0 {offsets = [0, 1], sizes = [8, 1], strides = [1, 1]} : vector<8x2xf32> to vector<8x1xf32>
    %8 = vector.extract_strided_slice %1 {offsets = [1, 0], sizes = [1, 176], strides = [1, 1]} : vector<8x176xf32> to vector<1x176xf32>
    %9 = vector.broadcast %7 : vector<8x1xf32> to vector<8x176xf32>
    %10 = vector.broadcast %8 : vector<1x176xf32> to vector<8x176xf32>
    %11 = arith.mulf %9, %10 : vector<8x176xf32>
    %12 = arith.addf %6, %11 : vector<8x176xf32>
    %13 = vector.extract_strided_slice %1 {offsets = [2, 0], sizes = [1, 176], strides = [1, 1]} : vector<8x176xf32> to vector<1x176xf32>
    %14 = vector.broadcast %13 : vector<1x176xf32> to vector<8x176xf32>
    %15 = arith.addf %12, %14 : vector<8x176xf32>
    %cst = arith.constant 0.000000e+00 : f32
    %16 = vector.broadcast %cst : f32 to vector<8x176xf32>
    %17 = arith.maximumf %15, %16 : vector<8x176xf32>
    %18 = arith.truncf %17 : vector<8x176xf32> to vector<8x176xbf16>
    %c0_3 = arith.constant 0 : index
    %c0_4 = arith.constant 0 : index
    %19 = vector.load %arg2[%c0_3, %c0_4] : memref<176x400xbf16, #tpu.memory_space<vmem>>, vector<176x400xbf16>
    %cst_5 = arith.constant dense<0.000000e+00> : vector<8x400xf32>
    %20 = tpu.matmul %18, %19, %cst_5 {dimension_numbers = #tpu.dot_dimension_numbers<[1], [0], [0], [1], [0, 0, 1, 1], [], []>} : vector<8x176xbf16>, vector<176x400xbf16>, vector<8x400xf32> -> vector<8x400xf32>
    %cst_6 = arith.constant 0.000000e+00 : f32
    %21 = vector.broadcast %cst_6 : f32 to vector<8x400xf32>
    %22 = arith.maximumf %20, %21 : vector<8x400xf32>
    %23 = arith.truncf %22 : vector<8x400xf32> to vector<8x400xbf16>
    %c0_7 = arith.constant 0 : index
    %c0_8 = arith.constant 0 : index
    %24 = vector.load %arg3[%c0_7, %c0_8] : memref<400x784xbf16, #tpu.memory_space<vmem>>, vector<400x784xbf16>
    %cst_9 = arith.constant dense<0.000000e+00> : vector<8x784xf32>
    %25 = tpu.matmul %23, %24, %cst_9 {dimension_numbers = #tpu.dot_dimension_numbers<[1], [0], [0], [1], [0, 0, 1, 1], [], []>} : vector<8x400xbf16>, vector<400x784xbf16>, vector<8x784xf32> -> vector<8x784xf32>
    %c0_10 = arith.constant 0 : index
    %c0_11 = arith.constant 0 : index
    %26 = vector.load %arg4[%c0_10, %c0_11] : memref<1x784xf32, #tpu.memory_space<vmem>>, vector<1x784xf32>
    %27 = vector.broadcast %26 : vector<1x784xf32> to vector<8x784xf32>
    %28 = arith.addf %25, %27 : vector<8x784xf32>
    %c0_12 = arith.constant 0 : index
    %c0_13 = arith.constant 0 : index
    %29 = vector.load %arg5[%c0_12, %c0_13] : memref<8x784xf32, #tpu.memory_space<vmem>>, vector<8x784xf32>
    tpu.vector_store %arg5[%c0_12, %c0_13], %28 {strides = array<i32>} : memref<8x784xf32, #tpu.memory_space<vmem>>, vector<8x784xf32>,
    return
  }
}

</mosaic_0001>

<llo_original>
// kernel: decoder2_forward.1
$region0: #{decoder2_forward.1}
  #allocation0 [shape = 'u32[]', space=smem, size = 0x4, offset = 0x4, fixed_abs, tag = 'smem constant byte address 0x4 - core index']
  #allocation1 [shape = 'u32[72,128]{1,0:T(1,128)}', space=vmem, size = 0x9000, scoped, tag = 'internal scratch']
  %s0 = inlined_call_operand.vmem [shape: f32[8,2], index: 0, kind: input, shape index: {}]
  %s1 = inlined_call_operand.hbm [shape: f32[8,176], index: 1, kind: input, shape index: {}]
  %s2 = inlined_call_operand.hbm [shape: bf16[176,400], index: 2, kind: input, shape index: {}]
  %s3 = inlined_call_operand.hbm [shape: bf16[400,784], index: 3, kind: input, shape index: {}]
  %s4 = inlined_call_operand.vmem [shape: f32[1,784], index: 4, kind: input, shape index: {}]
  %s5 = inlined_call_operand.hbm [shape: f32[8,784], index: 5, kind: output, shape index: {}]
  %s6 = sld [smem:[#allocation0]]
  $region42: #{decoder2_forward.1} parent=0
    _
  %s8 = ssub.s32 1, %s6
  %s9 = scalar_select 0, %s8, %s6
  $region1: #{decoder2_forward.1} parent=0
    #allocation2 [shape = 'u8[8192]{0}', space=vmem, size = 0x2000, scoped, tag = 'input window, operand 1, single buffered']
    #allocation3 [shape = 's32[1]{0}', space=sflag, size = 0x4, scoped, tag = 'scoped memory for decoder2_forward.1']
    #allocation4 [shape = 's32[1]{0}', space=sflag, size = 0x4, scoped, tag = 'scoped memory for decoder2_forward.1']
    #allocation5 [shape = 'u8[180224]{0}', space=vmem, size = 0x2c000, scoped, tag = 'input window, operand 2, single buffered']
    #allocation6 [shape = 's32[1]{0}', space=sflag, size = 0x4, scoped, tag = 'scoped memory for decoder2_forward.1']
    #allocation7 [shape = 'u8[716800]{0}', space=vmem, size = 0xaf000, scoped, tag = 'input window, operand 3, single buffered']
    #allocation8 [shape = 'u8[28672]{0}', space=vmem, size = 0x7000, scoped, tag = 'output window, operand 0, single buffered']
    %10 = vsyncpa [#allocation3], 0
    %11 = vsyncpa [#allocation6], 0
    %12 = vsyncpa [#allocation4], 0
    // Predicated region
    $region2: #{decoder2_forward.1} parent=1 // pred_check
      _
    $region3: #{decoder2_forward.1} parent=1 // pred_check_branch
      %14 = sbr.rel (0) target = $region5
    $region4: #{decoder2_forward.1} parent=1 // pred_region
      _
    $region5: #{decoder2_forward.1} parent=1 // pred_fallthru
      _
    // Predicated region
    $region6: #{decoder2_forward.1} parent=1 // pred_check
      _
    $region7: #{decoder2_forward.1} parent=1 // pred_check_branch
      %16 = sbr.rel (0) target = $region9
    $region8: #{decoder2_forward.1} parent=1 // pred_region
      %18 = vsyncadd [#allocation3], 0
      %s20 = sshll.u32 %s1, 4
      %s21 = int_to_ptr.hbm [resolvable:$true] %s20
      %s22 = sshll.u32 [#allocation2], 4
      %s23 = int_to_ptr.vmem [resolvable:$true] %s22
      %25 = dma.hbm_to_vmem [thread:$0]  %s21, 256, %s23, [#allocation3]
    $region9: #{decoder2_forward.1} parent=1 // pred_fallthru
      _
    // Predicated region
    $region10: #{decoder2_forward.1} parent=1 // pred_check
      _
    $region11: #{decoder2_forward.1} parent=1 // pred_check_branch
      %27 = sbr.rel (0) target = $region13
    $region12: #{decoder2_forward.1} parent=1 // pred_region
      %29 = vsyncadd [#allocation6], 0
      %s30 = sshll.u32 %s2, 4
      %s31 = int_to_ptr.hbm [resolvable:$true] %s30
      %s32 = sshll.u32 [#allocation5], 4
      %s33 = int_to_ptr.vmem [resolvable:$true] %s32
      %38 = dma.hbm_to_vmem [thread:$0]  %s31, 5632, %s33, [#allocation6], 256, 256, 16
    $region13: #{decoder2_forward.1} parent=1 // pred_fallthru
      _
    // Predicated region
    $region14: #{decoder2_forward.1} parent=1 // pred_check
      _
    $region15: #{decoder2_forward.1} parent=1 // pred_check_branch
      %40 = sbr.rel (0) target = $region17
    $region16: #{decoder2_forward.1} parent=1 // pred_region
      %42 = vsyncadd [#allocation6], 0
      %s43 = sshll.u32 %s3, 4
      %s44 = int_to_ptr.hbm [resolvable:$true] %s43
      %s45 = sshll.u32 [#allocation7], 4
      %s46 = int_to_ptr.vmem [resolvable:$true] %s45
      %51 = dma.hbm_to_vmem [thread:$0]  %s44, 22400, %s46, [#allocation6], 448, 448, 28
    $region17: #{decoder2_forward.1} parent=1 // pred_fallthru
      _
    // Predicated region
    $region18: #{decoder2_forward.1} parent=1 // pred_check
      _
    $region19: #{decoder2_forward.1} parent=1 // pred_check_branch
      %53 = sbr.rel (0) target = $region21
    $region20: #{decoder2_forward.1} parent=1 // pred_region
      _
    $region21: #{decoder2_forward.1} parent=1 // pred_fallthru
      _
    // Predicated region
    $region22: #{decoder2_forward.1} parent=1 // pred_check
      _
    $region23: #{decoder2_forward.1} parent=1 // pred_check_branch
      %55 = sbr.rel (0) target = $region25
    $region24: #{decoder2_forward.1} parent=1 // pred_region
      %57 = dma.done [#allocation3], 256
    $region25: #{decoder2_forward.1} parent=1 // pred_fallthru
      _
    // Predicated region
    $region26: #{decoder2_forward.1} parent=1 // pred_check
      _
    $region27: #{decoder2_forward.1} parent=1 // pred_check_branch
      %59 = sbr.rel (0) target = $region29
    $region28: #{decoder2_forward.1} parent=1 // pred_region
      %61 = dma.done [#allocation6], 5632
    $region29: #{decoder2_forward.1} parent=1 // pred_fallthru
      _
    // Predicated region
    $region30: #{decoder2_forward.1} parent=1 // pred_check
      _
    $region31: #{decoder2_forward.1} parent=1 // pred_check_branch
      %63 = sbr.rel (0) target = $region33
    $region32: #{decoder2_forward.1} parent=1 // pred_region
      %65 = dma.done [#allocation6], 22400
    $region33: #{decoder2_forward.1} parent=1 // pred_fallthru
      _
    %v67 = vld [vmem:[%s0] sm:$0xff]
    %v68 = vld [vmem:[#allocation2] sm:$0xff]
    %v69 = vld [vmem:[#allocation2 + $0x8] sm:$0xff]
    %71 = vset.pattern.permute.xlu0 0
    %72 = vperm.xlu0 %71, %v67
    %v73 = vpop.permute.xlu0 %72
    %v75 = vperm.slane %v68, 0
    %v76 = vperm.slane %v69, 0
    %v77 = vmul.f32 %v73, %v75
    %v78 = vmul.f32 %v73, %v76
    %79 = vset.pattern.permute.xlu0 1
    %80 = vperm.xlu0 %79, %v67
    %v81 = vpop.permute.xlu0 %80
    %v83 = vperm.slane %v68, 1
    %v84 = vperm.slane %v69, 1
    %v85 = vmul.f32 %v81, %v83
    %v86 = vmul.f32 %v81, %v84
    %v87 = vadd.f32 %v77, %v85
    %v88 = vadd.f32 %v78, %v86
    %v89 = vperm.slane %v68, 2
    %v90 = vperm.slane %v69, 2
    %v91 = vadd.f32 %v87, %v89
    %v92 = vadd.f32 %v88, %v90
    %v93 = vmax.f32 %v91, 0.0
    %v94 = vmax.f32 %v92, 0.0
    %v95 = vpack.c.bf16 %v93, %v93
    %v96 = vpack.c.bf16 %v94, %v94
    %v97 = vld [vmem:[#allocation5] sm:$0xff]
    %v98 = vld [vmem:[#allocation5 + $0x8] sm:$0xff]
    %v99 = vld [vmem:[#allocation5 + $0x10] sm:$0xff]
    %v100 = vld [vmem:[#allocation5 + $0x18] sm:$0xff]
    %v101 = vld [vmem:[#allocation5 + $0x20] sm:$0xff]
    %v102 = vld [vmem:[#allocation5 + $0x28] sm:$0xff]
    %v103 = vld [vmem:[#allocation5 + $0x30] sm:$0xff]
    %v104 = vld [vmem:[#allocation5 + $0x38] sm:$0xff]
    %v105 = vld [vmem:[#allocation5 + $0x40] sm:$0xff]
    %v106 = vld [vmem:[#allocation5 + $0x48] sm:$0xff]
    %v107 = vld [vmem:[#allocation5 + $0x50] sm:$0xff]
    %v108 = vld [vmem:[#allocation5 + $0x58] sm:$0xff]
    %v109 = vld [vmem:[#allocation5 + $0x60] sm:$0xff]
    %v110 = vld [vmem:[#allocation5 + $0x68] sm:$0xff]
    %v111 = vld [vmem:[#allocation5 + $0x70] sm:$0xff]
    %v112 = vld [vmem:[#allocation5 + $0x78] sm:$0xff]
    %v113 = vld [vmem:[#allocation5 + $0x80] sm:$0xff]
    %v114 = vld [vmem:[#allocation5 + $0x88] sm:$0xff]
    %v115 = vld [vmem:[#allocation5 + $0x90] sm:$0xff]
    %v116 = vld [vmem:[#allocation5 + $0x98] sm:$0xff]
    %v117 = vld [vmem:[#allocation5 + $0xa0] sm:$0xff]
    %v118 = vld [vmem:[#allocation5 + $0xa8] sm:$0xff]
    %v119 = vld [vmem:[#allocation5 + $0xb0] sm:$0xff]
    %v120 = vld [vmem:[#allocation5 + $0xb8] sm:$0xff]
    %v121 = vld [vmem:[#allocation5 + $0xc0] sm:$0xff]
    %v122 = vld [vmem:[#allocation5 + $0xc8] sm:$0xff]
    %v123 = vld [vmem:[#allocation5 + $0xd0] sm:$0xff]
    %v124 = vld [vmem:[#allocation5 + $0xd8] sm:$0xff]
    %v125 = vld [vmem:[#allocation5 + $0xe0] sm:$0xff]
    %v126 = vld [vmem:[#allocation5 + $0xe8] sm:$0xff]
    %v127 = vld [vmem:[#allocation5 + $0xf0] sm:$0xff]
    %v128 = vld [vmem:[#allocation5 + $0xf8] sm:$0xff]
    %v129 = vld [vmem:[#allocation5 + $0x100] sm:$0xff]
    %v130 = vld [vmem:[#allocation5 + $0x108] sm:$0xff]
    %v131 = vld [vmem:[#allocation5 + $0x110] sm:$0xff]
    %v132 = vld [vmem:[#allocation5 + $0x118] sm:$0xff]
    %v133 = vld [vmem:[#allocation5 + $0x120] sm:$0xff]
    %v134 = vld [vmem:[#allocation5 + $0x128] sm:$0xff]
    %v135 = vld [vmem:[#allocation5 + $0x130] sm:$0xff]
    %v136 = vld [vmem:[#allocation5 + $0x138] sm:$0xff]
    %v137 = vld [vmem:[#allocation5 + $0x140] sm:$0xff]
    %v138 = vld [vmem:[#allocation5 + $0x148] sm:$0xff]
    %v139 = vld [vmem:[#allocation5 + $0x150] sm:$0xff]
    %v140 = vld [vmem:[#allocation5 + $0x158] sm:$0xff]
    %v185 = vunpack.c.l.b16 %v97
    %v186 = vunpack.c.h.b16 %v97
    %v187 = vunpack.c.l.b16 %v98
    %v188 = vunpack.c.h.b16 %v98
    %v189 = vunpack.c.l.b16 %v99
    %v190 = vunpack.c.h.b16 %v99
    %v191 = vunpack.c.l.b16 %v100
    %v192 = vunpack.c.h.b16 %v100
    %v193 = vunpack.c.l.b16 %v101
    %v194 = vunpack.c.h.b16 %v101
    %v195 = vunpack.c.l.b16 %v102
    %v196 = vunpack.c.h.b16 %v102
    %v197 = vunpack.c.l.b16 %v103
    %v198 = vunpack.c.h.b16 %v103
    %v199 = vunpack.c.l.b16 %v104
    %v200 = vunpack.c.h.b16 %v104
    %v201 = vunpack.c.l.b16 %v105
    %v202 = vunpack.c.h.b16 %v105
    %v203 = vunpack.c.l.b16 %v106
    %v204 = vunpack.c.h.b16 %v106
    %v205 = vunpack.c.l.b16 %v107
    %v206 = vunpack.c.h.b16 %v107
    %v207 = vunpack.c.l.b16 %v108
    %v208 = vunpack.c.h.b16 %v108
    %v209 = vunpack.c.l.b16 %v109
    %v210 = vunpack.c.h.b16 %v109
    %v211 = vunpack.c.l.b16 %v110
    %v212 = vunpack.c.h.b16 %v110
    %v213 = vunpack.c.l.b16 %v111
    %v214 = vunpack.c.h.b16 %v111
    %v215 = vunpack.c.l.b16 %v112
    %v216 = vunpack.c.h.b16 %v112
    %v217 = vunpack.c.l.b16 %v113
    %v218 = vunpack.c.h.b16 %v113
    %v219 = vunpack.c.l.b16 %v114
    %v220 = vunpack.c.h.b16 %v114
    %v221 = vunpack.c.l.b16 %v115
    %v222 = vunpack.c.h.b16 %v115
    %v223 = vunpack.c.l.b16 %v116
    %v224 = vunpack.c.h.b16 %v116
    %v225 = vunpack.c.l.b16 %v117
    %v226 = vunpack.c.h.b16 %v117
    %v227 = vunpack.c.l.b16 %v118
    %v228 = vunpack.c.h.b16 %v118
    %v229 = vunpack.c.l.b16 %v119
    %v230 = vunpack.c.h.b16 %v119
    %v231 = vunpack.c.l.b16 %v120
    %v232 = vunpack.c.h.b16 %v120
    %v233 = vunpack.c.l.b16 %v121
    %v234 = vunpack.c.h.b16 %v121
    %v235 = vunpack.c.l.b16 %v122
    %v236 = vunpack.c.h.b16 %v122
    %v237 = vunpack.c.l.b16 %v123
    %v238 = vunpack.c.h.b16 %v123
    %v239 = vunpack.c.l.b16 %v124
    %v240 = vunpack.c.h.b16 %v124
    %v241 = vunpack.c.l.b16 %v125
    %v242 = vunpack.c.h.b16 %v125
    %v243 = vunpack.c.l.b16 %v126
    %v244 = vunpack.c.h.b16 %v126
    %v245 = vunpack.c.l.b16 %v127
    %v246 = vunpack.c.h.b16 %v127
    %v247 = vunpack.c.l.b16 %v128
    %v248 = vunpack.c.h.b16 %v128
    %v249 = vunpack.c.l.b16 %v129
    %v250 = vunpack.c.h.b16 %v129
    %v251 = vunpack.c.l.b16 %v130
    %v252 = vunpack.c.h.b16 %v130
    %v253 = vunpack.c.l.b16 %v131
    %v254 = vunpack.c.h.b16 %v131
    %v255 = vunpack.c.l.b16 %v132
    %v256 = vunpack.c.h.b16 %v132
    %v257 = vunpack.c.l.b16 %v133
    %v258 = vunpack.c.h.b16 %v133
    %v259 = vunpack.c.l.b16 %v134
    %v260 = vunpack.c.h.b16 %v134
    %v261 = vunpack.c.l.b16 %v135
    %v262 = vunpack.c.h.b16 %v135
    %v263 = vunpack.c.l.b16 %v136
    %v264 = vunpack.c.h.b16 %v136
    %v265 = vunpack.c.l.b16 %v137
    %v266 = vunpack.c.h.b16 %v137
    %v267 = vunpack.c.l.b16 %v138
    %v268 = vunpack.c.h.b16 %v138
    %v269 = vunpack.c.l.b16 %v139
    %v270 = vunpack.c.h.b16 %v139
    %v271 = vunpack.c.l.b16 %v140
    %v272 = vunpack.c.h.b16 %v140
    %v273 = vpack.c.b16 %v189, %v185
    %v274 = vpack.c.b16 %v190, %v186
    %v275 = vpack.c.b16 %v191, %v187
    %v276 = vpack.c.b16 %v192, %v188
    %v277 = vpack.c.b16 %v197, %v193
    %v278 = vpack.c.b16 %v198, %v194
    %v279 = vpack.c.b16 %v199, %v195
    %v280 = vpack.c.b16 %v200, %v196
    %v281 = vpack.c.b16 %v205, %v201
    %v282 = vpack.c.b16 %v206, %v202
    %v283 = vpack.c.b16 %v207, %v203
    %v284 = vpack.c.b16 %v208, %v204
    %v285 = vpack.c.b16 %v213, %v209
    %v286 = vpack.c.b16 %v214, %v210
    %v287 = vpack.c.b16 %v215, %v211
    %v288 = vpack.c.b16 %v216, %v212
    %v289 = vpack.c.b16 %v221, %v217
    %v290 = vpack.c.b16 %v222, %v218
    %v291 = vpack.c.b16 %v223, %v219
    %v292 = vpack.c.b16 %v224, %v220
    %v293 = vpack.c.b16 %v229, %v225
    %v294 = vpack.c.b16 %v230, %v226
    %v295 = vpack.c.b16 %v231, %v227
    %v296 = vpack.c.b16 %v232, %v228
    %v297 = vpack.c.b16 %v237, %v233
    %v298 = vpack.c.b16 %v238, %v234
    %v299 = vpack.c.b16 %v239, %v235
    %v300 = vpack.c.b16 %v240, %v236
    %v301 = vpack.c.b16 %v245, %v241
    %v302 = vpack.c.b16 %v246, %v242
    %v303 = vpack.c.b16 %v247, %v243
    %v304 = vpack.c.b16 %v248, %v244
    %v305 = vpack.c.b16 %v253, %v249
    %v306 = vpack.c.b16 %v254, %v250
    %v307 = vpack.c.b16 %v255, %v251
    %v308 = vpack.c.b16 %v256, %v252
    %v309 = vpack.c.b16 %v261, %v257
    %v310 = vpack.c.b16 %v262, %v258
    %v311 = vpack.c.b16 %v263, %v259
    %v312 = vpack.c.b16 %v264, %v260
    %v313 = vpack.c.b16 %v269, %v265
    %v314 = vpack.c.b16 %v270, %v266
    %v315 = vpack.c.b16 %v271, %v267
    %v316 = vpack.c.b16 %v272, %v268
    %vm361 = vcmask 392192
    %v363 = vsel %vm361, %v96, 0
    %365 = vmatpush.bf16.msra.mxu0 %v301
    %366 = vmatpush.bf16.msra.mxu0 %v297
    %367 = vmatpush.bf16.msra.mxu0 %v293
    %368 = vmatpush.bf16.msra.mxu0 %v289
    %369 = vmatpush.bf16.msra.mxu0 %v285
    %370 = vmatpush.bf16.msra.mxu0 %v281
    %371 = vmatpush.bf16.msra.mxu0 %v277
    %372 = vmatpush.bf16.msra.mxu0 %v273
    %373 = vmatmul.bf16.gmra.mxu0 %v95
    %v374 = vpop.f32.mrf.mxu0
    %v375 = vadd.f32 0.0, %v374
    %v376 = vpop.f32.mrf.mxu0
    %377 = vdwg.mxu0
    %378 = vmatpush.bf16.msra.mxu0 0
    %379 = vmatpush.bf16.msra.mxu0 0
    %380 = vmatpush.bf16.msra.mxu0 0
    %381 = vmatpush.bf16.msra.mxu0 0
    %382 = vmatpush.bf16.msra.mxu0 0
    %383 = vmatpush.bf16.msra.mxu0 %v313
    %384 = vmatpush.bf16.msra.mxu0 %v309
    %385 = vmatpush.bf16.msra.mxu0 %v305
    %386 = vmatmul.bf16.gmra.mxu0 %v363
    %v387 = vpop.f32.mrf.mxu0
    %v388 = vadd.f32 %v375, %v387
    %v389 = vpop.f32.mrf.mxu0
    %390 = vdwg.mxu0
    %391 = vmatpush.bf16.msra.mxu0 %v302
    %392 = vmatpush.bf16.msra.mxu0 %v298
    %393 = vmatpush.bf16.msra.mxu0 %v294
    %394 = vmatpush.bf16.msra.mxu0 %v290
    %395 = vmatpush.bf16.msra.mxu0 %v286
    %396 = vmatpush.bf16.msra.mxu0 %v282
    %397 = vmatpush.bf16.msra.mxu0 %v278
    %398 = vmatpush.bf16.msra.mxu0 %v274
    %399 = vmatmul.bf16.gmra.mxu0 %v95
    %v400 = vpop.f32.mrf.mxu0
    %v401 = vadd.f32 0.0, %v400
    %v402 = vpop.f32.mrf.mxu0
    %403 = vdwg.mxu0
    %404 = vmatpush.bf16.msra.mxu0 0
    %405 = vmatpush.bf16.msra.mxu0 0
    %406 = vmatpush.bf16.msra.mxu0 0
    %407 = vmatpush.bf16.msra.mxu0 0
    %408 = vmatpush.bf16.msra.mxu0 0
    %409 = vmatpush.bf16.msra.mxu0 %v314
    %410 = vmatpush.bf16.msra.mxu0 %v310
    %411 = vmatpush.bf16.msra.mxu0 %v306
    %412 = vmatmul.bf16.gmra.mxu0 %v363
    %v413 = vpop.f32.mrf.mxu0
    %v414 = vadd.f32 %v401, %v413
    %v415 = vpop.f32.mrf.mxu0
    %416 = vdwg.mxu0
    %417 = vmatpush.bf16.msra.mxu0 %v303
    %418 = vmatpush.bf16.msra.mxu0 %v299
    %419 = vmatpush.bf16.msra.mxu0 %v295
    %420 = vmatpush.bf16.msra.mxu0 %v291
    %421 = vmatpush.bf16.msra.mxu0 %v287
    %422 = vmatpush.bf16.msra.mxu0 %v283
    %423 = vmatpush.bf16.msra.mxu0 %v279
    %424 = vmatpush.bf16.msra.mxu0 %v275
    %425 = vmatmul.bf16.gmra.mxu0 %v95
    %v426 = vpop.f32.mrf.mxu0
    %v427 = vadd.f32 0.0, %v426
    %v428 = vpop.f32.mrf.mxu0
    %429 = vdwg.mxu0
    %430 = vmatpush.bf16.msra.mxu0 0
    %431 = vmatpush.bf16.msra.mxu0 0
    %432 = vmatpush.bf16.msra.mxu0 0
    %433 = vmatpush.bf16.msra.mxu0 0
    %434 = vmatpush.bf16.msra.mxu0 0
    %435 = vmatpush.bf16.msra.mxu0 %v315
    %436 = vmatpush.bf16.msra.mxu0 %v311
    %437 = vmatpush.bf16.msra.mxu0 %v307
    %438 = vmatmul.bf16.gmra.mxu0 %v363
    %v439 = vpop.f32.mrf.mxu0
    %v440 = vadd.f32 %v427, %v439
    %v441 = vpop.f32.mrf.mxu0
    %442 = vdwg.mxu0
    %443 = vmatpush.bf16.msra.mxu0 %v304
    %444 = vmatpush.bf16.msra.mxu0 %v300
    %445 = vmatpush.bf16.msra.mxu0 %v296
    %446 = vmatpush.bf16.msra.mxu0 %v292
    %447 = vmatpush.bf16.msra.mxu0 %v288
    %448 = vmatpush.bf16.msra.mxu0 %v284
    %449 = vmatpush.bf16.msra.mxu0 %v280
    %450 = vmatpush.bf16.msra.mxu0 %v276
    %451 = vmatmul.bf16.gmra.mxu0 %v95
    %v452 = vpop.f32.mrf.mxu0
    %v453 = vadd.f32 0.0, %v452
    %v454 = vpop.f32.mrf.mxu0
    %455 = vdwg.mxu0
    %456 = vmatpush.bf16.msra.mxu0 0
    %457 = vmatpush.bf16.msra.mxu0 0
    %458 = vmatpush.bf16.msra.mxu0 0
    %459 = vmatpush.bf16.msra.mxu0 0
    %460 = vmatpush.bf16.msra.mxu0 0
    %461 = vmatpush.bf16.msra.mxu0 %v316
    %462 = vmatpush.bf16.msra.mxu0 %v312
    %463 = vmatpush.bf16.msra.mxu0 %v308
    %464 = vmatmul.bf16.gmra.mxu0 %v363
    %v465 = vpop.f32.mrf.mxu0
    %v466 = vadd.f32 %v453, %v465
    %v467 = vpop.f32.mrf.mxu0
    %468 = vdwg.mxu0
    %v469 = vmax.f32 %v388, 0.0
    %v470 = vmax.f32 %v414, 0.0
    %v471 = vmax.f32 %v440, 0.0
    %v472 = vmax.f32 %v466, 0.0
    %v473 = vpack.c.bf16 %v469, %v469
    %v474 = vpack.c.bf16 %v470, %v470
    %v475 = vpack.c.bf16 %v471, %v471
    %v476 = vpack.c.bf16 %v472, %v472
    %v477 = vld [vmem:[#allocation7] sm:$0xff]
    %v478 = vld [vmem:[#allocation7 + $0x8] sm:$0xff]
    %v479 = vld [vmem:[#allocation7 + $0x10] sm:$0xff]
    %v480 = vld [vmem:[#allocation7 + $0x18] sm:$0xf]
    %v481 = vld [vmem:[#allocation7 + $0x1c] sm:$0xff]
    %v482 = vld [vmem:[#allocation7 + $0x24] sm:$0xff]
    %v483 = vld [vmem:[#allocation7 + $0x2c] sm:$0xff]
    %v484 = vld [vmem:[#allocation7 + $0x34] sm:$0xf]
    %v485 = vld [vmem:[#allocation7 + $0x38] sm:$0xff]
    %v486 = vld [vmem:[#allocation7 + $0x40] sm:$0xff]
    %v487 = vld [vmem:[#allocation7 + $0x48] sm:$0xff]
    %v488 = vld [vmem:[#allocation7 + $0x50] sm:$0xf]
    %v489 = vld [vmem:[#allocation7 + $0x54] sm:$0xff]
    %v490 = vld [vmem:[#allocation7 + $0x5c] sm:$0xff]
    %v491 = vld [vmem:[#allocation7 + $0x64] sm:$0xff]
    %v492 = vld [vmem:[#allocation7 + $0x6c] sm:$0xf]
    %v493 = vld [vmem:[#allocation7 + $0x70] sm:$0xff]
    %v494 = vld [vmem:[#allocation7 + $0x78] sm:$0xff]
    %v495 = vld [vmem:[#allocation7 + $0x80] sm:$0xff]
    %v496 = vld [vmem:[#allocation7 + $0x88] sm:$0xf]
    %v497 = vld [vmem:[#allocation7 + $0x8c] sm:$0xff]
    %v498 = vld [vmem:[#allocation7 + $0x94] sm:$0xff]
    %v499 = vld [vmem:[#allocation7 + $0x9c] sm:$0xff]
    %v500 = vld [vmem:[#allocation7 + $0xa4] sm:$0xf]
    %v501 = vld [vmem:[#allocation7 + $0xa8] sm:$0xff]
    %v502 = vld [vmem:[#allocation7 + $0xb0] sm:$0xff]
    %v503 = vld [vmem:[#allocation7 + $0xb8] sm:$0xff]
    %v504 = vld [vmem:[#allocation7 + $0xc0] sm:$0xf]
    %v505 = vld [vmem:[#allocation7 + $0xc4] sm:$0xff]
    %v506 = vld [vmem:[#allocation7 + $0xcc] sm:$0xff]
    %v507 = vld [vmem:[#allocation7 + $0xd4] sm:$0xff]
    %v508 = vld [vmem:[#allocation7 + $0xdc] sm:$0xf]
    %v509 = vld [vmem:[#allocation7 + $0xe0] sm:$0xff]
    %v510 = vld [vmem:[#allocation7 + $0xe8] sm:$0xff]
    %v511 = vld [vmem:[#allocation7 + $0xf0] sm:$0xff]
    %v512 = vld [vmem:[#allocation7 + $0xf8] sm:$0xf]
    %v513 = vld [vmem:[#allocation7 + $0xfc] sm:$0xff]
    %v514 = vld [vmem:[#allocation7 + $0x104] sm:$0xff]
    %v515 = vld [vmem:[#allocation7 + $0x10c] sm:$0xff]
    %v516 = vld [vmem:[#allocation7 + $0x114] sm:$0xf]
    %v517 = vld [vmem:[#allocation7 + $0x118] sm:$0xff]
    %v518 = vld [vmem:[#allocation7 + $0x120] sm:$0xff]
    %v519 = vld [vmem:[#allocation7 + $0x128] sm:$0xff]
    %v520 = vld [vmem:[#allocation7 + $0x130] sm:$0xf]
    %v521 = vld [vmem:[#allocation7 + $0x134] sm:$0xff]
    %v522 = vld [vmem:[#allocation7 + $0x13c] sm:$0xff]
    %v523 = vld [vmem:[#allocation7 + $0x144] sm:$0xff]
    %v524 = vld [vmem:[#allocation7 + $0x14c] sm:$0xf]
    %v525 = vld [vmem:[#allocation7 + $0x150] sm:$0xff]
    %v526 = vld [vmem:[#allocation7 + $0x158] sm:$0xff]
    %v527 = vld [vmem:[#allocation7 + $0x160] sm:$0xff]
    %v528 = vld [vmem:[#allocation7 + $0x168] sm:$0xf]
    %v529 = vld [vmem:[#allocation7 + $0x16c] sm:$0xff]
    %v530 = vld [vmem:[#allocation7 + $0x174] sm:$0xff]
    %v531 = vld [vmem:[#allocation7 + $0x17c] sm:$0xff]
    %v532 = vld [vmem:[#allocation7 + $0x184] sm:$0xf]
    %v533 = vld [vmem:[#allocation7 + $0x188] sm:$0xff]
    %v534 = vld [vmem:[#allocation7 + $0x190] sm:$0xff]
    %v535 = vld [vmem:[#allocation7 + $0x198] sm:$0xff]
    %v536 = vld [vmem:[#allocation7 + $0x1a0] sm:$0xf]
    %v537 = vld [vmem:[#allocation7 + $0x1a4] sm:$0xff]
    %v538 = vld [vmem:[#allocation7 + $0x1ac] sm:$0xff]
    %v539 = vld [vmem:[#allocation7 + $0x1b4] sm:$0xff]
    %v540 = vld [vmem:[#allocation7 + $0x1bc] sm:$0xf]
    %v541 = vld [vmem:[#allocation7 + $0x1c0] sm:$0xff]
    %v542 = vld [vmem:[#allocation7 + $0x1c8] sm:$0xff]
    %v543 = vld [vmem:[#allocation7 + $0x1d0] sm:$0xff]
    %v544 = vld [vmem:[#allocation7 + $0x1d8] sm:$0xf]
    %v545 = vld [vmem:[#allocation7 + $0x1dc] sm:$0xff]
    %v546 = vld [vmem:[#allocation7 + $0x1e4] sm:$0xff]
    %v547 = vld [vmem:[#allocation7 + $0x1ec] sm:$0xff]
    %v548 = vld [vmem:[#allocation7 + $0x1f4] sm:$0xf]
    %v549 = vld [vmem:[#allocation7 + $0x1f8] sm:$0xff]
    %v550 = vld [vmem:[#allocation7 + $0x200] sm:$0xff]
    %v551 = vld [vmem:[#allocation7 + $0x208] sm:$0xff]
    %v552 = vld [vmem:[#allocation7 + $0x210] sm:$0xf]
    %v553 = vld [vmem:[#allocation7 + $0x214] sm:$0xff]
    %v554 = vld [vmem:[#allocation7 + $0x21c] sm:$0xff]
    %v555 = vld [vmem:[#allocation7 + $0x224] sm:$0xff]
    %v556 = vld [vmem:[#allocation7 + $0x22c] sm:$0xf]
    %v557 = vld [vmem:[#allocation7 + $0x230] sm:$0xff]
    %v558 = vld [vmem:[#allocation7 + $0x238] sm:$0xff]
    %v559 = vld [vmem:[#allocation7 + $0x240] sm:$0xff]
    %v560 = vld [vmem:[#allocation7 + $0x248] sm:$0xf]
    %v561 = vld [vmem:[#allocation7 + $0x24c] sm:$0xff]
    %v562 = vld [vmem:[#allocation7 + $0x254] sm:$0xff]
    %v563 = vld [vmem:[#allocation7 + $0x25c] sm:$0xff]
    %v564 = vld [vmem:[#allocation7 + $0x264] sm:$0xf]
    %v565 = vld [vmem:[#allocation7 + $0x268] sm:$0xff]
    %v566 = vld [vmem:[#allocation7 + $0x270] sm:$0xff]
    %v567 = vld [vmem:[#allocation7 + $0x278] sm:$0xff]
    %v568 = vld [vmem:[#allocation7 + $0x280] sm:$0xf]
    %v569 = vld [vmem:[#allocation7 + $0x284] sm:$0xff]
    %v570 = vld [vmem:[#allocation7 + $0x28c] sm:$0xff]
    %v571 = vld [vmem:[#allocation7 + $0x294] sm:$0xff]
    %v572 = vld [vmem:[#allocation7 + $0x29c] sm:$0xf]
    %v573 = vld [vmem:[#allocation7 + $0x2a0] sm:$0xff]
    %v574 = vld [vmem:[#allocation7 + $0x2a8] sm:$0xff]
    %v575 = vld [vmem:[#allocation7 + $0x2b0] sm:$0xff]
    %v576 = vld [vmem:[#allocation7 + $0x2b8] sm:$0xf]
    %v577 = vld [vmem:[#allocation7 + $0x2bc] sm:$0xff]
    %v578 = vld [vmem:[#allocation7 + $0x2c4] sm:$0xff]
    %v579 = vld [vmem:[#allocation7 + $0x2cc] sm:$0xff]
    %v580 = vld [vmem:[#allocation7 + $0x2d4] sm:$0xf]
    %v581 = vld [vmem:[#allocation7 + $0x2d8] sm:$0xff]
    %v582 = vld [vmem:[#allocation7 + $0x2e0] sm:$0xff]
    %v583 = vld [vmem:[#allocation7 + $0x2e8] sm:$0xff]
    %v584 = vld [vmem:[#allocation7 + $0x2f0] sm:$0xf]
    %v585 = vld [vmem:[#allocation7 + $0x2f4] sm:$0xff]
    %v586 = vld [vmem:[#allocation7 + $0x2fc] sm:$0xff]
    %v587 = vld [vmem:[#allocation7 + $0x304] sm:$0xff]
    %v588 = vld [vmem:[#allocation7 + $0x30c] sm:$0xf]
    %v589 = vld [vmem:[#allocation7 + $0x310] sm:$0xff]
    %v590 = vld [vmem:[#allocation7 + $0x318] sm:$0xff]
    %v591 = vld [vmem:[#allocation7 + $0x320] sm:$0xff]
    %v592 = vld [vmem:[#allocation7 + $0x328] sm:$0xf]
    %v593 = vld [vmem:[#allocation7 + $0x32c] sm:$0xff]
    %v594 = vld [vmem:[#allocation7 + $0x334] sm:$0xff]
    %v595 = vld [vmem:[#allocation7 + $0x33c] sm:$0xff]
    %v596 = vld [vmem:[#allocation7 + $0x344] sm:$0xf]
    %v597 = vld [vmem:[#allocation7 + $0x348] sm:$0xff]
    %v598 = vld [vmem:[#allocation7 + $0x350] sm:$0xff]
    %v599 = vld [vmem:[#allocation7 + $0x358] sm:$0xff]
    %v600 = vld [vmem:[#allocation7 + $0x360] sm:$0xf]
    %v601 = vld [vmem:[#allocation7 + $0x364] sm:$0xff]
    %v602 = vld [vmem:[#allocation7 + $0x36c] sm:$0xff]
    %v603 = vld [vmem:[#allocation7 + $0x374] sm:$0xff]
    %v604 = vld [vmem:[#allocation7 + $0x37c] sm:$0xf]
    %v605 = vld [vmem:[#allocation7 + $0x380] sm:$0xff]
    %v606 = vld [vmem:[#allocation7 + $0x388] sm:$0xff]
    %v607 = vld [vmem:[#allocation7 + $0x390] sm:$0xff]
    %v608 = vld [vmem:[#allocation7 + $0x398] sm:$0xf]
    %v609 = vld [vmem:[#allocation7 + $0x39c] sm:$0xff]
    %v610 = vld [vmem:[#allocation7 + $0x3a4] sm:$0xff]
    %v611 = vld [vmem:[#allocation7 + $0x3ac] sm:$0xff]
    %v612 = vld [vmem:[#allocation7 + $0x3b4] sm:$0xf]
    %v613 = vld [vmem:[#allocation7 + $0x3b8] sm:$0xff]
    %v614 = vld [vmem:[#allocation7 + $0x3c0] sm:$0xff]
    %v615 = vld [vmem:[#allocation7 + $0x3c8] sm:$0xff]
    %v616 = vld [vmem:[#allocation7 + $0x3d0] sm:$0xf]
    %v617 = vld [vmem:[#allocation7 + $0x3d4] sm:$0xff]
    %v618 = vld [vmem:[#allocation7 + $0x3dc] sm:$0xff]
    %v619 = vld [vmem:[#allocation7 + $0x3e4] sm:$0xff]
    %v620 = vld [vmem:[#allocation7 + $0x3ec] sm:$0xf]
    %v621 = vld [vmem:[#allocation7 + $0x3f0] sm:$0xff]
    %v622 = vld [vmem:[#allocation7 + $0x3f8] sm:$0xff]
    %v623 = vld [vmem:[#allocation7 + $0x400] sm:$0xff]
    %v624 = vld [vmem:[#allocation7 + $0x408] sm:$0xf]
    %v625 = vld [vmem:[#allocation7 + $0x40c] sm:$0xff]
    %v626 = vld [vmem:[#allocation7 + $0x414] sm:$0xff]
    %v627 = vld [vmem:[#allocation7 + $0x41c] sm:$0xff]
    %v628 = vld [vmem:[#allocation7 + $0x424] sm:$0xf]
    %v629 = vld [vmem:[#allocation7 + $0x428] sm:$0xff]
    %v630 = vld [vmem:[#allocation7 + $0x430] sm:$0xff]
    %v631 = vld [vmem:[#allocation7 + $0x438] sm:$0xff]
    %v632 = vld [vmem:[#allocation7 + $0x440] sm:$0xf]
    %v633 = vld [vmem:[#allocation7 + $0x444] sm:$0xff]
    %v634 = vld [vmem:[#allocation7 + $0x44c] sm:$0xff]
    %v635 = vld [vmem:[#allocation7 + $0x454] sm:$0xff]
    %v636 = vld [vmem:[#allocation7 + $0x45c] sm:$0xf]
    %v637 = vld [vmem:[#allocation7 + $0x460] sm:$0xff]
    %v638 = vld [vmem:[#allocation7 + $0x468] sm:$0xff]
    %v639 = vld [vmem:[#allocation7 + $0x470] sm:$0xff]
    %v640 = vld [vmem:[#allocation7 + $0x478] sm:$0xf]
    %v641 = vld [vmem:[#allocation7 + $0x47c] sm:$0xff]
    %v642 = vld [vmem:[#allocation7 + $0x484] sm:$0xff]
    %v643 = vld [vmem:[#allocation7 + $0x48c] sm:$0xff]
    %v644 = vld [vmem:[#allocation7 + $0x494] sm:$0xf]
    %v645 = vld [vmem:[#allocation7 + $0x498] sm:$0xff]
    %v646 = vld [vmem:[#allocation7 + $0x4a0] sm:$0xff]
    %v647 = vld [vmem:[#allocation7 + $0x4a8] sm:$0xff]
    %v648 = vld [vmem:[#allocation7 + $0x4b0] sm:$0xf]
    %v649 = vld [vmem:[#allocation7 + $0x4b4] sm:$0xff]
    %v650 = vld [vmem:[#allocation7 + $0x4bc] sm:$0xff]
    %v651 = vld [vmem:[#allocation7 + $0x4c4] sm:$0xff]
    %v652 = vld [vmem:[#allocation7 + $0x4cc] sm:$0xf]
    %v653 = vld [vmem:[#allocation7 + $0x4d0] sm:$0xff]
    %v654 = vld [vmem:[#allocation7 + $0x4d8] sm:$0xff]
    %v655 = vld [vmem:[#allocation7 + $0x4e0] sm:$0xff]
    %v656 = vld [vmem:[#allocation7 + $0x4e8] sm:$0xf]
    %v657 = vld [vmem:[#allocation7 + $0x4ec] sm:$0xff]
    %v658 = vld [vmem:[#allocation7 + $0x4f4] sm:$0xff]
    %v659 = vld [vmem:[#allocation7 + $0x4fc] sm:$0xff]
    %v660 = vld [vmem:[#allocation7 + $0x504] sm:$0xf]
    %v661 = vld [vmem:[#allocation7 + $0x508] sm:$0xff]
    %v662 = vld [vmem:[#allocation7 + $0x510] sm:$0xff]
    %v663 = vld [vmem:[#allocation7 + $0x518] sm:$0xff]
    %v664 = vld [vmem:[#allocation7 + $0x520] sm:$0xf]
    %v665 = vld [vmem:[#allocation7 + $0x524] sm:$0xff]
    %v666 = vld [vmem:[#allocation7 + $0x52c] sm:$0xff]
    %v667 = vld [vmem:[#allocation7 + $0x534] sm:$0xff]
    %v668 = vld [vmem:[#allocation7 + $0x53c] sm:$0xf]
    %v669 = vld [vmem:[#allocation7 + $0x540] sm:$0xff]
    %v670 = vld [vmem:[#allocation7 + $0x548] sm:$0xff]
    %v671 = vld [vmem:[#allocation7 + $0x550] sm:$0xff]
    %v672 = vld [vmem:[#allocation7 + $0x558] sm:$0xf]
    %v673 = vld [vmem:[#allocation7 + $0x55c] sm:$0xff]
    %v674 = vld [vmem:[#allocation7 + $0x564] sm:$0xff]
    %v675 = vld [vmem:[#allocation7 + $0x56c] sm:$0xff]
    %v676 = vld [vmem:[#allocation7 + $0x574] sm:$0xf]
    %v677 = vld [vmem:[%s4] sm:$0x7f]
    %v679 = vperm.slane %v677, 0
    %v680 = vperm.slane %v677, 1
    %v681 = vperm.slane %v677, 2
    %v682 = vperm.slane %v677, 3
    %v683 = vperm.slane %v677, 4
    %v684 = vperm.slane %v677, 5
    %v685 = vperm.slane %v677, 6
    %v893 = vunpack.c.l.b16 %v477
    %v894 = vunpack.c.h.b16 %v477
    %v895 = vunpack.c.l.b16 %v478
    %v896 = vunpack.c.h.b16 %v478
    %v897 = vunpack.c.l.b16 %v479
    %v898 = vunpack.c.h.b16 %v479
    %v899 = vunpack.c.l.b16 %v480
    %v900 = vunpack.c.l.b16 %v481
    %v901 = vunpack.c.h.b16 %v481
    %v902 = vunpack.c.l.b16 %v482
    %v903 = vunpack.c.h.b16 %v482
    %v904 = vunpack.c.l.b16 %v483
    %v905 = vunpack.c.h.b16 %v483
    %v906 = vunpack.c.l.b16 %v484
    %v907 = vunpack.c.l.b16 %v485
    %v908 = vunpack.c.h.b16 %v485
    %v909 = vunpack.c.l.b16 %v486
    %v910 = vunpack.c.h.b16 %v486
    %v911 = vunpack.c.l.b16 %v487
    %v912 = vunpack.c.h.b16 %v487
    %v913 = vunpack.c.l.b16 %v488
    %v914 = vunpack.c.l.b16 %v489
    %v915 = vunpack.c.h.b16 %v489
    %v916 = vunpack.c.l.b16 %v490
    %v917 = vunpack.c.h.b16 %v490
    %v918 = vunpack.c.l.b16 %v491
    %v919 = vunpack.c.h.b16 %v491
    %v920 = vunpack.c.l.b16 %v492
    %v921 = vunpack.c.l.b16 %v493
    %v922 = vunpack.c.h.b16 %v493
    %v923 = vunpack.c.l.b16 %v494
    %v924 = vunpack.c.h.b16 %v494
    %v925 = vunpack.c.l.b16 %v495
    %v926 = vunpack.c.h.b16 %v495
    %v927 = vunpack.c.l.b16 %v496
    %v928 = vunpack.c.l.b16 %v497
    %v929 = vunpack.c.h.b16 %v497
    %v930 = vunpack.c.l.b16 %v498
    %v931 = vunpack.c.h.b16 %v498
    %v932 = vunpack.c.l.b16 %v499
    %v933 = vunpack.c.h.b16 %v499
    %v934 = vunpack.c.l.b16 %v500
    %v935 = vunpack.c.l.b16 %v501
    %v936 = vunpack.c.h.b16 %v501
    %v937 = vunpack.c.l.b16 %v502
    %v938 = vunpack.c.h.b16 %v502
    %v939 = vunpack.c.l.b16 %v503
    %v940 = vunpack.c.h.b16 %v503
    %v941 = vunpack.c.l.b16 %v504
    %v942 = vunpack.c.l.b16 %v505
    %v943 = vunpack.c.h.b16 %v505
    %v944 = vunpack.c.l.b16 %v506
    %v945 = vunpack.c.h.b16 %v506
    %v946 = vunpack.c.l.b16 %v507
    %v947 = vunpack.c.h.b16 %v507
    %v948 = vunpack.c.l.b16 %v508
    %v949 = vunpack.c.l.b16 %v509
    %v950 = vunpack.c.h.b16 %v509
    %v951 = vunpack.c.l.b16 %v510
    %v952 = vunpack.c.h.b16 %v510
    %v953 = vunpack.c.l.b16 %v511
    %v954 = vunpack.c.h.b16 %v511
    %v955 = vunpack.c.l.b16 %v512
    %v956 = vunpack.c.l.b16 %v513
    %v957 = vunpack.c.h.b16 %v513
    %v958 = vunpack.c.l.b16 %v514
    %v959 = vunpack.c.h.b16 %v514
    %v960 = vunpack.c.l.b16 %v515
    %v961 = vunpack.c.h.b16 %v515
    %v962 = vunpack.c.l.b16 %v516
    %v963 = vunpack.c.l.b16 %v517
    %v964 = vunpack.c.h.b16 %v517
    %v965 = vunpack.c.l.b16 %v518
    %v966 = vunpack.c.h.b16 %v518
    %v967 = vunpack.c.l.b16 %v519
    %v968 = vunpack.c.h.b16 %v519
    %v969 = vunpack.c.l.b16 %v520
    %v970 = vunpack.c.l.b16 %v521
    %v971 = vunpack.c.h.b16 %v521
    %v972 = vunpack.c.l.b16 %v522
    %v973 = vunpack.c.h.b16 %v522
    %v974 = vunpack.c.l.b16 %v523
    %v975 = vunpack.c.h.b16 %v523
    %v976 = vunpack.c.l.b16 %v524
    %v977 = vunpack.c.l.b16 %v525
    %v978 = vunpack.c.h.b16 %v525
    %v979 = vunpack.c.l.b16 %v526
    %v980 = vunpack.c.h.b16 %v526
    %v981 = vunpack.c.l.b16 %v527
    %v982 = vunpack.c.h.b16 %v527
    %v983 = vunpack.c.l.b16 %v528
    %v984 = vunpack.c.l.b16 %v529
    %v985 = vunpack.c.h.b16 %v529
    %v986 = vunpack.c.l.b16 %v530
    %v987 = vunpack.c.h.b16 %v530
    %v988 = vunpack.c.l.b16 %v531
    %v989 = vunpack.c.h.b16 %v531
    %v990 = vunpack.c.l.b16 %v532
    %v991 = vunpack.c.l.b16 %v533
    %v992 = vunpack.c.h.b16 %v533
    %v993 = vunpack.c.l.b16 %v534
    %v994 = vunpack.c.h.b16 %v534
    %v995 = vunpack.c.l.b16 %v535
    %v996 = vunpack.c.h.b16 %v535
    %v997 = vunpack.c.l.b16 %v536
    %v998 = vunpack.c.l.b16 %v537
    %v999 = vunpack.c.h.b16 %v537
    %v1000 = vunpack.c.l.b16 %v538
    %v1001 = vunpack.c.h.b16 %v538
    %v1002 = vunpack.c.l.b16 %v539
    %v1003 = vunpack.c.h.b16 %v539
    %v1004 = vunpack.c.l.b16 %v540
    %v1005 = vunpack.c.l.b16 %v541
    %v1006 = vunpack.c.h.b16 %v541
    %v1007 = vunpack.c.l.b16 %v542
    %v1008 = vunpack.c.h.b16 %v542
    %v1009 = vunpack.c.l.b16 %v543
    %v1010 = vunpack.c.h.b16 %v543
    %v1011 = vunpack.c.l.b16 %v544
    %v1012 = vunpack.c.l.b16 %v545
    %v1013 = vunpack.c.h.b16 %v545
    %v1014 = vunpack.c.l.b16 %v546
    %v1015 = vunpack.c.h.b16 %v546
    %v1016 = vunpack.c.l.b16 %v547
    %v1017 = vunpack.c.h.b16 %v547
    %v1018 = vunpack.c.l.b16 %v548
    %v1019 = vunpack.c.l.b16 %v549
    %v1020 = vunpack.c.h.b16 %v549
    %v1021 = vunpack.c.l.b16 %v550
    %v1022 = vunpack.c.h.b16 %v550
    %v1023 = vunpack.c.l.b16 %v551
    %v1024 = vunpack.c.h.b16 %v551
    %v1025 = vunpack.c.l.b16 %v552
    %v1026 = vunpack.c.l.b16 %v553
    %v1027 = vunpack.c.h.b16 %v553
    %v1028 = vunpack.c.l.b16 %v554
    %v1029 = vunpack.c.h.b16 %v554
    %v1030 = vunpack.c.l.b16 %v555
    %v1031 = vunpack.c.h.b16 %v555
    %v1032 = vunpack.c.l.b16 %v556
    %v1033 = vunpack.c.l.b16 %v557
    %v1034 = vunpack.c.h.b16 %v557
    %v1035 = vunpack.c.l.b16 %v558
    %v1036 = vunpack.c.h.b16 %v558
    %v1037 = vunpack.c.l.b16 %v559
    %v1038 = vunpack.c.h.b16 %v559
    %v1039 = vunpack.c.l.b16 %v560
    %v1040 = vunpack.c.l.b16 %v561
    %v1041 = vunpack.c.h.b16 %v561
    %v1042 = vunpack.c.l.b16 %v562
    %v1043 = vunpack.c.h.b16 %v562
    %v1044 = vunpack.c.l.b16 %v563
    %v1045 = vunpack.c.h.b16 %v563
    %v1046 = vunpack.c.l.b16 %v564
    %v1047 = vunpack.c.l.b16 %v565
    %v1048 = vunpack.c.h.b16 %v565
    %v1049 = vunpack.c.l.b16 %v566
    %v1050 = vunpack.c.h.b16 %v566
    %v1051 = vunpack.c.l.b16 %v567
    %v1052 = vunpack.c.h.b16 %v567
    %v1053 = vunpack.c.l.b16 %v568
    %v1054 = vunpack.c.l.b16 %v569
    %v1055 = vunpack.c.h.b16 %v569
    %v1056 = vunpack.c.l.b16 %v570
    %v1057 = vunpack.c.h.b16 %v570
    %v1058 = vunpack.c.l.b16 %v571
    %v1059 = vunpack.c.h.b16 %v571
    %v1060 = vunpack.c.l.b16 %v572
    %v1061 = vunpack.c.l.b16 %v573
    %v1062 = vunpack.c.h.b16 %v573
    %v1063 = vunpack.c.l.b16 %v574
    %v1064 = vunpack.c.h.b16 %v574
    %v1065 = vunpack.c.l.b16 %v575
    %v1066 = vunpack.c.h.b16 %v575
    %v1067 = vunpack.c.l.b16 %v576
    %v1068 = vunpack.c.l.b16 %v577
    %v1069 = vunpack.c.h.b16 %v577
    %v1070 = vunpack.c.l.b16 %v578
    %v1071 = vunpack.c.h.b16 %v578
    %v1072 = vunpack.c.l.b16 %v579
    %v1073 = vunpack.c.h.b16 %v579
    %v1074 = vunpack.c.l.b16 %v580
    %v1075 = vunpack.c.l.b16 %v581
    %v1076 = vunpack.c.h.b16 %v581
    %v1077 = vunpack.c.l.b16 %v582
    %v1078 = vunpack.c.h.b16 %v582
    %v1079 = vunpack.c.l.b16 %v583
    %v1080 = vunpack.c.h.b16 %v583
    %v1081 = vunpack.c.l.b16 %v584
    %v1082 = vunpack.c.l.b16 %v585
    %v1083 = vunpack.c.h.b16 %v585
    %v1084 = vunpack.c.l.b16 %v586
    %v1085 = vunpack.c.h.b16 %v586
    %v1086 = vunpack.c.l.b16 %v587
    %v1087 = vunpack.c.h.b16 %v587
    %v1088 = vunpack.c.l.b16 %v588
    %v1089 = vunpack.c.l.b16 %v589
    %v1090 = vunpack.c.h.b16 %v589
    %v1091 = vunpack.c.l.b16 %v590
    %v1092 = vunpack.c.h.b16 %v590
    %v1093 = vunpack.c.l.b16 %v591
    %v1094 = vunpack.c.h.b16 %v591
    %v1095 = vunpack.c.l.b16 %v592
    %v1096 = vunpack.c.l.b16 %v593
    %v1097 = vunpack.c.h.b16 %v593
    %v1098 = vunpack.c.l.b16 %v594
    %v1099 = vunpack.c.h.b16 %v594
    %v1100 = vunpack.c.l.b16 %v595
    %v1101 = vunpack.c.h.b16 %v595
    %v1102 = vunpack.c.l.b16 %v596
    %v1103 = vunpack.c.l.b16 %v597
    %v1104 = vunpack.c.h.b16 %v597
    %v1105 = vunpack.c.l.b16 %v598
    %v1106 = vunpack.c.h.b16 %v598
    %v1107 = vunpack.c.l.b16 %v599
    %v1108 = vunpack.c.h.b16 %v599
    %v1109 = vunpack.c.l.b16 %v600
    %v1110 = vunpack.c.l.b16 %v601
    %v1111 = vunpack.c.h.b16 %v601
    %v1112 = vunpack.c.l.b16 %v602
    %v1113 = vunpack.c.h.b16 %v602
    %v1114 = vunpack.c.l.b16 %v603
    %v1115 = vunpack.c.h.b16 %v603
    %v1116 = vunpack.c.l.b16 %v604
    %v1117 = vunpack.c.l.b16 %v605
    %v1118 = vunpack.c.h.b16 %v605
    %v1119 = vunpack.c.l.b16 %v606
    %v1120 = vunpack.c.h.b16 %v606
    %v1121 = vunpack.c.l.b16 %v607
    %v1122 = vunpack.c.h.b16 %v607
    %v1123 = vunpack.c.l.b16 %v608
    %v1124 = vunpack.c.l.b16 %v609
    %v1125 = vunpack.c.h.b16 %v609
    %v1126 = vunpack.c.l.b16 %v610
    %v1127 = vunpack.c.h.b16 %v610
    %v1128 = vunpack.c.l.b16 %v611
    %v1129 = vunpack.c.h.b16 %v611
    %v1130 = vunpack.c.l.b16 %v612
    %v1131 = vunpack.c.l.b16 %v613
    %v1132 = vunpack.c.h.b16 %v613
    %v1133 = vunpack.c.l.b16 %v614
    %v1134 = vunpack.c.h.b16 %v614
    %v1135 = vunpack.c.l.b16 %v615
    %v1136 = vunpack.c.h.b16 %v615
    %v1137 = vunpack.c.l.b16 %v616
    %v1138 = vunpack.c.l.b16 %v617
    %v1139 = vunpack.c.h.b16 %v617
    %v1140 = vunpack.c.l.b16 %v618
    %v1141 = vunpack.c.h.b16 %v618
    %v1142 = vunpack.c.l.b16 %v619
    %v1143 = vunpack.c.h.b16 %v619
    %v1144 = vunpack.c.l.b16 %v620
    %v1145 = vunpack.c.l.b16 %v621
    %v1146 = vunpack.c.h.b16 %v621
    %v1147 = vunpack.c.l.b16 %v622
    %v1148 = vunpack.c.h.b16 %v622
    %v1149 = vunpack.c.l.b16 %v623
    %v1150 = vunpack.c.h.b16 %v623
    %v1151 = vunpack.c.l.b16 %v624
    %v1152 = vunpack.c.l.b16 %v625
    %v1153 = vunpack.c.h.b16 %v625
    %v1154 = vunpack.c.l.b16 %v626
    %v1155 = vunpack.c.h.b16 %v626
    %v1156 = vunpack.c.l.b16 %v627
    %v1157 = vunpack.c.h.b16 %v627
    %v1158 = vunpack.c.l.b16 %v628
    %v1159 = vunpack.c.l.b16 %v629
    %v1160 = vunpack.c.h.b16 %v629
    %v1161 = vunpack.c.l.b16 %v630
    %v1162 = vunpack.c.h.b16 %v630
    %v1163 = vunpack.c.l.b16 %v631
    %v1164 = vunpack.c.h.b16 %v631
    %v1165 = vunpack.c.l.b16 %v632
    %v1166 = vunpack.c.l.b16 %v633
    %v1167 = vunpack.c.h.b16 %v633
    %v1168 = vunpack.c.l.b16 %v634
    %v1169 = vunpack.c.h.b16 %v634
    %v1170 = vunpack.c.l.b16 %v635
    %v1171 = vunpack.c.h.b16 %v635
    %v1172 = vunpack.c.l.b16 %v636
    %v1173 = vunpack.c.l.b16 %v637
    %v1174 = vunpack.c.h.b16 %v637
    %v1175 = vunpack.c.l.b16 %v638
    %v1176 = vunpack.c.h.b16 %v638
    %v1177 = vunpack.c.l.b16 %v639
    %v1178 = vunpack.c.h.b16 %v639
    %v1179 = vunpack.c.l.b16 %v640
    %v1180 = vunpack.c.l.b16 %v641
    %v1181 = vunpack.c.h.b16 %v641
    %v1182 = vunpack.c.l.b16 %v642
    %v1183 = vunpack.c.h.b16 %v642
    %v1184 = vunpack.c.l.b16 %v643
    %v1185 = vunpack.c.h.b16 %v643
    %v1186 = vunpack.c.l.b16 %v644
    %v1187 = vunpack.c.l.b16 %v645
    %v1188 = vunpack.c.h.b16 %v645
    %v1189 = vunpack.c.l.b16 %v646
    %v1190 = vunpack.c.h.b16 %v646
    %v1191 = vunpack.c.l.b16 %v647
    %v1192 = vunpack.c.h.b16 %v647
    %v1193 = vunpack.c.l.b16 %v648
    %v1194 = vunpack.c.l.b16 %v649
    %v1195 = vunpack.c.h.b16 %v649
    %v1196 = vunpack.c.l.b16 %v650
    %v1197 = vunpack.c.h.b16 %v650
    %v1198 = vunpack.c.l.b16 %v651
    %v1199 = vunpack.c.h.b16 %v651
    %v1200 = vunpack.c.l.b16 %v652
    %v1201 = vunpack.c.l.b16 %v653
    %v1202 = vunpack.c.h.b16 %v653
    %v1203 = vunpack.c.l.b16 %v654
    %v1204 = vunpack.c.h.b16 %v654
    %v1205 = vunpack.c.l.b16 %v655
    %v1206 = vunpack.c.h.b16 %v655
    %v1207 = vunpack.c.l.b16 %v656
    %v1208 = vunpack.c.l.b16 %v657
    %v1209 = vunpack.c.h.b16 %v657
    %v1210 = vunpack.c.l.b16 %v658
    %v1211 = vunpack.c.h.b16 %v658
    %v1212 = vunpack.c.l.b16 %v659
    %v1213 = vunpack.c.h.b16 %v659
    %v1214 = vunpack.c.l.b16 %v660
    %v1215 = vunpack.c.l.b16 %v661
    %v1216 = vunpack.c.h.b16 %v661
    %v1217 = vunpack.c.l.b16 %v662
    %v1218 = vunpack.c.h.b16 %v662
    %v1219 = vunpack.c.l.b16 %v663
    %v1220 = vunpack.c.h.b16 %v663
    %v1221 = vunpack.c.l.b16 %v664
    %v1222 = vunpack.c.l.b16 %v665
    %v1223 = vunpack.c.h.b16 %v665
    %v1224 = vunpack.c.l.b16 %v666
    %v1225 = vunpack.c.h.b16 %v666
    %v1226 = vunpack.c.l.b16 %v667
    %v1227 = vunpack.c.h.b16 %v667
    %v1228 = vunpack.c.l.b16 %v668
    %v1229 = vunpack.c.l.b16 %v669
    %v1230 = vunpack.c.h.b16 %v669
    %v1231 = vunpack.c.l.b16 %v670
    %v1232 = vunpack.c.h.b16 %v670
    %v1233 = vunpack.c.l.b16 %v671
    %v1234 = vunpack.c.h.b16 %v671
    %v1235 = vunpack.c.l.b16 %v672
    %v1236 = vunpack.c.l.b16 %v673
    %v1237 = vunpack.c.h.b16 %v673
    %v1238 = vunpack.c.l.b16 %v674
    %v1239 = vunpack.c.h.b16 %v674
    %v1240 = vunpack.c.l.b16 %v675
    %v1241 = vunpack.c.h.b16 %v675
    %v1242 = vunpack.c.l.b16 %v676
    %v1243 = vpack.c.b16 %v900, %v893
    %v1244 = vpack.c.b16 %v901, %v894
    %v1245 = vpack.c.b16 %v902, %v895
    %v1246 = vpack.c.b16 %v903, %v896
    %v1247 = vpack.c.b16 %v904, %v897
    %v1248 = vpack.c.b16 %v905, %v898
    %v1249 = vpack.c.b16 %v906, %v899
    %v1250 = vpack.c.b16 %v914, %v907
    %v1251 = vpack.c.b16 %v915, %v908
    %v1252 = vpack.c.b16 %v916, %v909
    %v1253 = vpack.c.b16 %v917, %v910
    %v1254 = vpack.c.b16 %v918, %v911
    %v1255 = vpack.c.b16 %v919, %v912
    %v1256 = vpack.c.b16 %v920, %v913
    %v1257 = vpack.c.b16 %v928, %v921
    %v1258 = vpack.c.b16 %v929, %v922
    %v1259 = vpack.c.b16 %v930, %v923
    %v1260 = vpack.c.b16 %v931, %v924
    %v1261 = vpack.c.b16 %v932, %v925
    %v1262 = vpack.c.b16 %v933, %v926
    %v1263 = vpack.c.b16 %v934, %v927
    %v1264 = vpack.c.b16 %v942, %v935
    %v1265 = vpack.c.b16 %v943, %v936
    %v1266 = vpack.c.b16 %v944, %v937
    %v1267 = vpack.c.b16 %v945, %v938
    %v1268 = vpack.c.b16 %v946, %v939
    %v1269 = vpack.c.b16 %v947, %v940
    %v1270 = vpack.c.b16 %v948, %v941
    %v1271 = vpack.c.b16 %v956, %v949
    %v1272 = vpack.c.b16 %v957, %v950
    %v1273 = vpack.c.b16 %v958, %v951
    %v1274 = vpack.c.b16 %v959, %v952
    %v1275 = vpack.c.b16 %v960, %v953
    %v1276 = vpack.c.b16 %v961, %v954
    %v1277 = vpack.c.b16 %v962, %v955
    %v1278 = vpack.c.b16 %v970, %v963
    %v1279 = vpack.c.b16 %v971, %v964
    %v1280 = vpack.c.b16 %v972, %v965
    %v1281 = vpack.c.b16 %v973, %v966
    %v1282 = vpack.c.b16 %v974, %v967
    %v1283 = vpack.c.b16 %v975, %v968
    %v1284 = vpack.c.b16 %v976, %v969
    %v1285 = vpack.c.b16 %v984, %v977
    %v1286 = vpack.c.b16 %v985, %v978
    %v1287 = vpack.c.b16 %v986, %v979
    %v1288 = vpack.c.b16 %v987, %v980
    %v1289 = vpack.c.b16 %v988, %v981
    %v1290 = vpack.c.b16 %v989, %v982
    %v1291 = vpack.c.b16 %v990, %v983
    %v1292 = vpack.c.b16 %v998, %v991
    %v1293 = vpack.c.b16 %v999, %v992
    %v1294 = vpack.c.b16 %v1000, %v993
    %v1295 = vpack.c.b16 %v1001, %v994
    %v1296 = vpack.c.b16 %v1002, %v995
    %v1297 = vpack.c.b16 %v1003, %v996
    %v1298 = vpack.c.b16 %v1004, %v997
    %v1299 = vpack.c.b16 %v1012, %v1005
    %v1300 = vpack.c.b16 %v1013, %v1006
    %v1301 = vpack.c.b16 %v1014, %v1007
    %v1302 = vpack.c.b16 %v1015, %v1008
    %v1303 = vpack.c.b16 %v1016, %v1009
    %v1304 = vpack.c.b16 %v1017, %v1010
    %v1305 = vpack.c.b16 %v1018, %v1011
    %v1306 = vpack.c.b16 %v1026, %v1019
    %v1307 = vpack.c.b16 %v1027, %v1020
    %v1308 = vpack.c.b16 %v1028, %v1021
    %v1309 = vpack.c.b16 %v1029, %v1022
    %v1310 = vpack.c.b16 %v1030, %v1023
    %v1311 = vpack.c.b16 %v1031, %v1024
    %v1312 = vpack.c.b16 %v1032, %v1025
    %v1313 = vpack.c.b16 %v1040, %v1033
    %v1314 = vpack.c.b16 %v1041, %v1034
    %v1315 = vpack.c.b16 %v1042, %v1035
    %v1316 = vpack.c.b16 %v1043, %v1036
    %v1317 = vpack.c.b16 %v1044, %v1037
    %v1318 = vpack.c.b16 %v1045, %v1038
    %v1319 = vpack.c.b16 %v1046, %v1039
    %v1320 = vpack.c.b16 %v1054, %v1047
    %v1321 = vpack.c.b16 %v1055, %v1048
    %v1322 = vpack.c.b16 %v1056, %v1049
    %v1323 = vpack.c.b16 %v1057, %v1050
    %v1324 = vpack.c.b16 %v1058, %v1051
    %v1325 = vpack.c.b16 %v1059, %v1052
    %v1326 = vpack.c.b16 %v1060, %v1053
    %v1327 = vpack.c.b16 %v1068, %v1061
    %v1328 = vpack.c.b16 %v1069, %v1062
    %v1329 = vpack.c.b16 %v1070, %v1063
    %v1330 = vpack.c.b16 %v1071, %v1064
    %v1331 = vpack.c.b16 %v1072, %v1065
    %v1332 = vpack.c.b16 %v1073, %v1066
    %v1333 = vpack.c.b16 %v1074, %v1067
    %v1334 = vpack.c.b16 %v1082, %v1075
    %v1335 = vpack.c.b16 %v1083, %v1076
    %v1336 = vpack.c.b16 %v1084, %v1077
    %v1337 = vpack.c.b16 %v1085, %v1078
    %v1338 = vpack.c.b16 %v1086, %v1079
    %v1339 = vpack.c.b16 %v1087, %v1080
    %v1340 = vpack.c.b16 %v1088, %v1081
    %v1341 = vpack.c.b16 %v1096, %v1089
    %v1342 = vpack.c.b16 %v1097, %v1090
    %v1343 = vpack.c.b16 %v1098, %v1091
    %v1344 = vpack.c.b16 %v1099, %v1092
    %v1345 = vpack.c.b16 %v1100, %v1093
    %v1346 = vpack.c.b16 %v1101, %v1094
    %v1347 = vpack.c.b16 %v1102, %v1095
    %v1348 = vpack.c.b16 %v1110, %v1103
    %v1349 = vpack.c.b16 %v1111, %v1104
    %v1350 = vpack.c.b16 %v1112, %v1105
    %v1351 = vpack.c.b16 %v1113, %v1106
    %v1352 = vpack.c.b16 %v1114, %v1107
    %v1353 = vpack.c.b16 %v1115, %v1108
    %v1354 = vpack.c.b16 %v1116, %v1109
    %v1355 = vpack.c.b16 %v1124, %v1117
    %v1356 = vpack.c.b16 %v1125, %v1118
    %v1357 = vpack.c.b16 %v1126, %v1119
    %v1358 = vpack.c.b16 %v1127, %v1120
    %v1359 = vpack.c.b16 %v1128, %v1121
    %v1360 = vpack.c.b16 %v1129, %v1122
    %v1361 = vpack.c.b16 %v1130, %v1123
    %v1362 = vpack.c.b16 %v1138, %v1131
    %v1363 = vpack.c.b16 %v1139, %v1132
    %v1364 = vpack.c.b16 %v1140, %v1133
    %v1365 = vpack.c.b16 %v1141, %v1134
    %v1366 = vpack.c.b16 %v1142, %v1135
    %v1367 = vpack.c.b16 %v1143, %v1136
    %v1368 = vpack.c.b16 %v1144, %v1137
    %v1369 = vpack.c.b16 %v1152, %v1145
    %v1370 = vpack.c.b16 %v1153, %v1146
    %v1371 = vpack.c.b16 %v1154, %v1147
    %v1372 = vpack.c.b16 %v1155, %v1148
    %v1373 = vpack.c.b16 %v1156, %v1149
    %v1374 = vpack.c.b16 %v1157, %v1150
    %v1375 = vpack.c.b16 %v1158, %v1151
    %v1376 = vpack.c.b16 %v1166, %v1159
    %v1377 = vpack.c.b16 %v1167, %v1160
    %v1378 = vpack.c.b16 %v1168, %v1161
    %v1379 = vpack.c.b16 %v1169, %v1162
    %v1380 = vpack.c.b16 %v1170, %v1163
    %v1381 = vpack.c.b16 %v1171, %v1164
    %v1382 = vpack.c.b16 %v1172, %v1165
    %v1383 = vpack.c.b16 %v1180, %v1173
    %v1384 = vpack.c.b16 %v1181, %v1174
    %v1385 = vpack.c.b16 %v1182, %v1175
    %v1386 = vpack.c.b16 %v1183, %v1176
    %v1387 = vpack.c.b16 %v1184, %v1177
    %v1388 = vpack.c.b16 %v1185, %v1178
    %v1389 = vpack.c.b16 %v1186, %v1179
    %v1390 = vpack.c.b16 %v1194, %v1187
    %v1391 = vpack.c.b16 %v1195, %v1188
    %v1392 = vpack.c.b16 %v1196, %v1189
    %v1393 = vpack.c.b16 %v1197, %v1190
    %v1394 = vpack.c.b16 %v1198, %v1191
    %v1395 = vpack.c.b16 %v1199, %v1192
    %v1396 = vpack.c.b16 %v1200, %v1193
    %v1397 = vpack.c.b16 %v1208, %v1201
    %v1398 = vpack.c.b16 %v1209, %v1202
    %v1399 = vpack.c.b16 %v1210, %v1203
    %v1400 = vpack.c.b16 %v1211, %v1204
    %v1401 = vpack.c.b16 %v1212, %v1205
    %v1402 = vpack.c.b16 %v1213, %v1206
    %v1403 = vpack.c.b16 %v1214, %v1207
    %v1404 = vpack.c.b16 %v1222, %v1215
    %v1405 = vpack.c.b16 %v1223, %v1216
    %v1406 = vpack.c.b16 %v1224, %v1217
    %v1407 = vpack.c.b16 %v1225, %v1218
    %v1408 = vpack.c.b16 %v1226, %v1219
    %v1409 = vpack.c.b16 %v1227, %v1220
    %v1410 = vpack.c.b16 %v1228, %v1221
    %v1411 = vpack.c.b16 %v1236, %v1229
    %v1412 = vpack.c.b16 %v1237, %v1230
    %v1413 = vpack.c.b16 %v1238, %v1231
    %v1414 = vpack.c.b16 %v1239, %v1232
    %v1415 = vpack.c.b16 %v1240, %v1233
    %v1416 = vpack.c.b16 %v1241, %v1234
    %v1417 = vpack.c.b16 %v1242, %v1235
    %vm1593 = vcmask 130048
    %v1595 = vsel %vm1593, %v476, 0
    %1597 = vmatpush.bf16.msra.mxu0 %v1292
    %1598 = vmatpush.bf16.msra.mxu0 %v1285
    %1599 = vmatpush.bf16.msra.mxu0 %v1278
    %1600 = vmatpush.bf16.msra.mxu0 %v1271
    %1601 = vmatpush.bf16.msra.mxu0 %v1264
    %1602 = vmatpush.bf16.msra.mxu0 %v1257
    %1603 = vmatpush.bf16.msra.mxu0 %v1250
    %1604 = vmatpush.bf16.msra.mxu0 %v1243
    %1605 = vmatmul.bf16.gmra.mxu0 %v473
    %v1606 = vpop.f32.mrf.mxu0
    %v1607 = vadd.f32 %v679, %v1606
    %v1608 = vpop.f32.mrf.mxu0
    %1609 = vdwg.mxu0
    %1610 = vmatpush.bf16.msra.mxu0 %v1348
    %1611 = vmatpush.bf16.msra.mxu0 %v1341
    %1612 = vmatpush.bf16.msra.mxu0 %v1334
    %1613 = vmatpush.bf16.msra.mxu0 %v1327
    %1614 = vmatpush.bf16.msra.mxu0 %v1320
    %1615 = vmatpush.bf16.msra.mxu0 %v1313
    %1616 = vmatpush.bf16.msra.mxu0 %v1306
    %1617 = vmatpush.bf16.msra.mxu0 %v1299
    %1618 = vmatmul.bf16.gmra.mxu0 %v474
    %v1619 = vpop.f32.mrf.mxu0
    %v1620 = vadd.f32 %v1607, %v1619
    %v1621 = vpop.f32.mrf.mxu0
    %1622 = vdwg.mxu0
    %1623 = vmatpush.bf16.msra.mxu0 %v1404
    %1624 = vmatpush.bf16.msra.mxu0 %v1397
    %1625 = vmatpush.bf16.msra.mxu0 %v1390
    %1626 = vmatpush.bf16.msra.mxu0 %v1383
    %1627 = vmatpush.bf16.msra.mxu0 %v1376
    %1628 = vmatpush.bf16.msra.mxu0 %v1369
    %1629 = vmatpush.bf16.msra.mxu0 %v1362
    %1630 = vmatpush.bf16.msra.mxu0 %v1355
    %1631 = vmatmul.bf16.gmra.mxu0 %v475
    %v1632 = vpop.f32.mrf.mxu0
    %v1633 = vadd.f32 %v1620, %v1632
    %v1634 = vpop.f32.mrf.mxu0
    %1635 = vdwg.mxu0
    %1636 = vmatpush.bf16.msra.mxu0 0
    %1637 = vmatpush.bf16.msra.mxu0 0
    %1638 = vmatpush.bf16.msra.mxu0 0
    %1639 = vmatpush.bf16.msra.mxu0 0
    %1640 = vmatpush.bf16.msra.mxu0 0
    %1641 = vmatpush.bf16.msra.mxu0 0
    %1642 = vmatpush.bf16.msra.mxu0 0
    %1643 = vmatpush.bf16.msra.mxu0 %v1411
    %1644 = vmatmul.bf16.gmra.mxu0 %v1595
    %v1645 = vpop.f32.mrf.mxu0
    %v1646 = vadd.f32 %v1633, %v1645
    %v1647 = vpop.f32.mrf.mxu0
    %1648 = vdwg.mxu0
    %1649 = vmatpush.bf16.msra.mxu0 %v1293
    %1650 = vmatpush.bf16.msra.mxu0 %v1286
    %1651 = vmatpush.bf16.msra.mxu0 %v1279
    %1652 = vmatpush.bf16.msra.mxu0 %v1272
    %1653 = vmatpush.bf16.msra.mxu0 %v1265
    %1654 = vmatpush.bf16.msra.mxu0 %v1258
    %1655 = vmatpush.bf16.msra.mxu0 %v1251
    %1656 = vmatpush.bf16.msra.mxu0 %v1244
    %1657 = vmatmul.bf16.gmra.mxu0 %v473
    %v1658 = vpop.f32.mrf.mxu0
    %v1659 = vadd.f32 %v680, %v1658
    %v1660 = vpop.f32.mrf.mxu0
    %1661 = vdwg.mxu0
    %1662 = vmatpush.bf16.msra.mxu0 %v1349
    %1663 = vmatpush.bf16.msra.mxu0 %v1342
    %1664 = vmatpush.bf16.msra.mxu0 %v1335
    %1665 = vmatpush.bf16.msra.mxu0 %v1328
    %1666 = vmatpush.bf16.msra.mxu0 %v1321
    %1667 = vmatpush.bf16.msra.mxu0 %v1314
    %1668 = vmatpush.bf16.msra.mxu0 %v1307
    %1669 = vmatpush.bf16.msra.mxu0 %v1300
    %1670 = vmatmul.bf16.gmra.mxu0 %v474
    %v1671 = vpop.f32.mrf.mxu0
    %v1672 = vadd.f32 %v1659, %v1671
    %v1673 = vpop.f32.mrf.mxu0
    %1674 = vdwg.mxu0
    %1675 = vmatpush.bf16.msra.mxu0 %v1405
    %1676 = vmatpush.bf16.msra.mxu0 %v1398
    %1677 = vmatpush.bf16.msra.mxu0 %v1391
    %1678 = vmatpush.bf16.msra.mxu0 %v1384
    %1679 = vmatpush.bf16.msra.mxu0 %v1377
    %1680 = vmatpush.bf16.msra.mxu0 %v1370
    %1681 = vmatpush.bf16.msra.mxu0 %v1363
    %1682 = vmatpush.bf16.msra.mxu0 %v1356
    %1683 = vmatmul.bf16.gmra.mxu0 %v475
    %v1684 = vpop.f32.mrf.mxu0
    %v1685 = vadd.f32 %v1672, %v1684
    %v1686 = vpop.f32.mrf.mxu0
    %1687 = vdwg.mxu0
    %1688 = vmatpush.bf16.msra.mxu0 0
    %1689 = vmatpush.bf16.msra.mxu0 0
    %1690 = vmatpush.bf16.msra.mxu0 0
    %1691 = vmatpush.bf16.msra.mxu0 0
    %1692 = vmatpush.bf16.msra.mxu0 0
    %1693 = vmatpush.bf16.msra.mxu0 0
    %1694 = vmatpush.bf16.msra.mxu0 0
    %1695 = vmatpush.bf16.msra.mxu0 %v1412
    %1696 = vmatmul.bf16.gmra.mxu0 %v1595
    %v1697 = vpop.f32.mrf.mxu0
    %v1698 = vadd.f32 %v1685, %v1697
    %v1699 = vpop.f32.mrf.mxu0
    %1700 = vdwg.mxu0
    %1701 = vmatpush.bf16.msra.mxu0 %v1294
    %1702 = vmatpush.bf16.msra.mxu0 %v1287
    %1703 = vmatpush.bf16.msra.mxu0 %v1280
    %1704 = vmatpush.bf16.msra.mxu0 %v1273
    %1705 = vmatpush.bf16.msra.mxu0 %v1266
    %1706 = vmatpush.bf16.msra.mxu0 %v1259
    %1707 = vmatpush.bf16.msra.mxu0 %v1252
    %1708 = vmatpush.bf16.msra.mxu0 %v1245
    %1709 = vmatmul.bf16.gmra.mxu0 %v473
    %v1710 = vpop.f32.mrf.mxu0
    %v1711 = vadd.f32 %v681, %v1710
    %v1712 = vpop.f32.mrf.mxu0
    %1713 = vdwg.mxu0
    %1714 = vmatpush.bf16.msra.mxu0 %v1350
    %1715 = vmatpush.bf16.msra.mxu0 %v1343
    %1716 = vmatpush.bf16.msra.mxu0 %v1336
    %1717 = vmatpush.bf16.msra.mxu0 %v1329
    %1718 = vmatpush.bf16.msra.mxu0 %v1322
    %1719 = vmatpush.bf16.msra.mxu0 %v1315
    %1720 = vmatpush.bf16.msra.mxu0 %v1308
    %1721 = vmatpush.bf16.msra.mxu0 %v1301
    %1722 = vmatmul.bf16.gmra.mxu0 %v474
    %v1723 = vpop.f32.mrf.mxu0
    %v1724 = vadd.f32 %v1711, %v1723
    %v1725 = vpop.f32.mrf.mxu0
    %1726 = vdwg.mxu0
    %1727 = vmatpush.bf16.msra.mxu0 %v1406
    %1728 = vmatpush.bf16.msra.mxu0 %v1399
    %1729 = vmatpush.bf16.msra.mxu0 %v1392
    %1730 = vmatpush.bf16.msra.mxu0 %v1385
    %1731 = vmatpush.bf16.msra.mxu0 %v1378
    %1732 = vmatpush.bf16.msra.mxu0 %v1371
    %1733 = vmatpush.bf16.msra.mxu0 %v1364
    %1734 = vmatpush.bf16.msra.mxu0 %v1357
    %1735 = vmatmul.bf16.gmra.mxu0 %v475
    %v1736 = vpop.f32.mrf.mxu0
    %v1737 = vadd.f32 %v1724, %v1736
    %v1738 = vpop.f32.mrf.mxu0
    %1739 = vdwg.mxu0
    %1740 = vmatpush.bf16.msra.mxu0 0
    %1741 = vmatpush.bf16.msra.mxu0 0
    %1742 = vmatpush.bf16.msra.mxu0 0
    %1743 = vmatpush.bf16.msra.mxu0 0
    %1744 = vmatpush.bf16.msra.mxu0 0
    %1745 = vmatpush.bf16.msra.mxu0 0
    %1746 = vmatpush.bf16.msra.mxu0 0
    %1747 = vmatpush.bf16.msra.mxu0 %v1413
    %1748 = vmatmul.bf16.gmra.mxu0 %v1595
    %v1749 = vpop.f32.mrf.mxu0
    %v1750 = vadd.f32 %v1737, %v1749
    %v1751 = vpop.f32.mrf.mxu0
    %1752 = vdwg.mxu0
    %1753 = vmatpush.bf16.msra.mxu0 %v1295
    %1754 = vmatpush.bf16.msra.mxu0 %v1288
    %1755 = vmatpush.bf16.msra.mxu0 %v1281
    %1756 = vmatpush.bf16.msra.mxu0 %v1274
    %1757 = vmatpush.bf16.msra.mxu0 %v1267
    %1758 = vmatpush.bf16.msra.mxu0 %v1260
    %1759 = vmatpush.bf16.msra.mxu0 %v1253
    %1760 = vmatpush.bf16.msra.mxu0 %v1246
    %1761 = vmatmul.bf16.gmra.mxu0 %v473
    %v1762 = vpop.f32.mrf.mxu0
    %v1763 = vadd.f32 %v682, %v1762
    %v1764 = vpop.f32.mrf.mxu0
    %1765 = vdwg.mxu0
    %1766 = vmatpush.bf16.msra.mxu0 %v1351
    %1767 = vmatpush.bf16.msra.mxu0 %v1344
    %1768 = vmatpush.bf16.msra.mxu0 %v1337
    %1769 = vmatpush.bf16.msra.mxu0 %v1330
    %1770 = vmatpush.bf16.msra.mxu0 %v1323
    %1771 = vmatpush.bf16.msra.mxu0 %v1316
    %1772 = vmatpush.bf16.msra.mxu0 %v1309
    %1773 = vmatpush.bf16.msra.mxu0 %v1302
    %1774 = vmatmul.bf16.gmra.mxu0 %v474
    %v1775 = vpop.f32.mrf.mxu0
    %v1776 = vadd.f32 %v1763, %v1775
    %v1777 = vpop.f32.mrf.mxu0
    %1778 = vdwg.mxu0
    %1779 = vmatpush.bf16.msra.mxu0 %v1407
    %1780 = vmatpush.bf16.msra.mxu0 %v1400
    %1781 = vmatpush.bf16.msra.mxu0 %v1393
    %1782 = vmatpush.bf16.msra.mxu0 %v1386
    %1783 = vmatpush.bf16.msra.mxu0 %v1379
    %1784 = vmatpush.bf16.msra.mxu0 %v1372
    %1785 = vmatpush.bf16.msra.mxu0 %v1365
    %1786 = vmatpush.bf16.msra.mxu0 %v1358
    %1787 = vmatmul.bf16.gmra.mxu0 %v475
    %v1788 = vpop.f32.mrf.mxu0
    %v1789 = vadd.f32 %v1776, %v1788
    %v1790 = vpop.f32.mrf.mxu0
    %1791 = vdwg.mxu0
    %1792 = vmatpush.bf16.msra.mxu0 0
    %1793 = vmatpush.bf16.msra.mxu0 0
    %1794 = vmatpush.bf16.msra.mxu0 0
    %1795 = vmatpush.bf16.msra.mxu0 0
    %1796 = vmatpush.bf16.msra.mxu0 0
    %1797 = vmatpush.bf16.msra.mxu0 0
    %1798 = vmatpush.bf16.msra.mxu0 0
    %1799 = vmatpush.bf16.msra.mxu0 %v1414
    %1800 = vmatmul.bf16.gmra.mxu0 %v1595
    %v1801 = vpop.f32.mrf.mxu0
    %v1802 = vadd.f32 %v1789, %v1801
    %v1803 = vpop.f32.mrf.mxu0
    %1804 = vdwg.mxu0
    %1805 = vmatpush.bf16.msra.mxu0 %v1296
    %1806 = vmatpush.bf16.msra.mxu0 %v1289
    %1807 = vmatpush.bf16.msra.mxu0 %v1282
    %1808 = vmatpush.bf16.msra.mxu0 %v1275
    %1809 = vmatpush.bf16.msra.mxu0 %v1268
    %1810 = vmatpush.bf16.msra.mxu0 %v1261
    %1811 = vmatpush.bf16.msra.mxu0 %v1254
    %1812 = vmatpush.bf16.msra.mxu0 %v1247
    %1813 = vmatmul.bf16.gmra.mxu0 %v473
    %v1814 = vpop.f32.mrf.mxu0
    %v1815 = vadd.f32 %v683, %v1814
    %v1816 = vpop.f32.mrf.mxu0
    %1817 = vdwg.mxu0
    %1818 = vmatpush.bf16.msra.mxu0 %v1352
    %1819 = vmatpush.bf16.msra.mxu0 %v1345
    %1820 = vmatpush.bf16.msra.mxu0 %v1338
    %1821 = vmatpush.bf16.msra.mxu0 %v1331
    %1822 = vmatpush.bf16.msra.mxu0 %v1324
    %1823 = vmatpush.bf16.msra.mxu0 %v1317
    %1824 = vmatpush.bf16.msra.mxu0 %v1310
    %1825 = vmatpush.bf16.msra.mxu0 %v1303
    %1826 = vmatmul.bf16.gmra.mxu0 %v474
    %v1827 = vpop.f32.mrf.mxu0
    %v1828 = vadd.f32 %v1815, %v1827
    %v1829 = vpop.f32.mrf.mxu0
    %1830 = vdwg.mxu0
    %1831 = vmatpush.bf16.msra.mxu0 %v1408
    %1832 = vmatpush.bf16.msra.mxu0 %v1401
    %1833 = vmatpush.bf16.msra.mxu0 %v1394
    %1834 = vmatpush.bf16.msra.mxu0 %v1387
    %1835 = vmatpush.bf16.msra.mxu0 %v1380
    %1836 = vmatpush.bf16.msra.mxu0 %v1373
    %1837 = vmatpush.bf16.msra.mxu0 %v1366
    %1838 = vmatpush.bf16.msra.mxu0 %v1359
    %1839 = vmatmul.bf16.gmra.mxu0 %v475
    %v1840 = vpop.f32.mrf.mxu0
    %v1841 = vadd.f32 %v1828, %v1840
    %v1842 = vpop.f32.mrf.mxu0
    %1843 = vdwg.mxu0
    %1844 = vmatpush.bf16.msra.mxu0 0
    %1845 = vmatpush.bf16.msra.mxu0 0
    %1846 = vmatpush.bf16.msra.mxu0 0
    %1847 = vmatpush.bf16.msra.mxu0 0
    %1848 = vmatpush.bf16.msra.mxu0 0
    %1849 = vmatpush.bf16.msra.mxu0 0
    %1850 = vmatpush.bf16.msra.mxu0 0
    %1851 = vmatpush.bf16.msra.mxu0 %v1415
    %1852 = vmatmul.bf16.gmra.mxu0 %v1595
    %v1853 = vpop.f32.mrf.mxu0
    %v1854 = vadd.f32 %v1841, %v1853
    %v1855 = vpop.f32.mrf.mxu0
    %1856 = vdwg.mxu0
    %1857 = vmatpush.bf16.msra.mxu0 %v1297
    %1858 = vmatpush.bf16.msra.mxu0 %v1290
    %1859 = vmatpush.bf16.msra.mxu0 %v1283
    %1860 = vmatpush.bf16.msra.mxu0 %v1276
    %1861 = vmatpush.bf16.msra.mxu0 %v1269
    %1862 = vmatpush.bf16.msra.mxu0 %v1262
    %1863 = vmatpush.bf16.msra.mxu0 %v1255
    %1864 = vmatpush.bf16.msra.mxu0 %v1248
    %1865 = vmatmul.bf16.gmra.mxu0 %v473
    %v1866 = vpop.f32.mrf.mxu0
    %v1867 = vadd.f32 %v684, %v1866
    %v1868 = vpop.f32.mrf.mxu0
    %1869 = vdwg.mxu0
    %1870 = vmatpush.bf16.msra.mxu0 %v1353
    %1871 = vmatpush.bf16.msra.mxu0 %v1346
    %1872 = vmatpush.bf16.msra.mxu0 %v1339
    %1873 = vmatpush.bf16.msra.mxu0 %v1332
    %1874 = vmatpush.bf16.msra.mxu0 %v1325
    %1875 = vmatpush.bf16.msra.mxu0 %v1318
    %1876 = vmatpush.bf16.msra.mxu0 %v1311
    %1877 = vmatpush.bf16.msra.mxu0 %v1304
    %1878 = vmatmul.bf16.gmra.mxu0 %v474
    %v1879 = vpop.f32.mrf.mxu0
    %v1880 = vadd.f32 %v1867, %v1879
    %v1881 = vpop.f32.mrf.mxu0
    %1882 = vdwg.mxu0
    %1883 = vmatpush.bf16.msra.mxu0 %v1409
    %1884 = vmatpush.bf16.msra.mxu0 %v1402
    %1885 = vmatpush.bf16.msra.mxu0 %v1395
    %1886 = vmatpush.bf16.msra.mxu0 %v1388
    %1887 = vmatpush.bf16.msra.mxu0 %v1381
    %1888 = vmatpush.bf16.msra.mxu0 %v1374
    %1889 = vmatpush.bf16.msra.mxu0 %v1367
    %1890 = vmatpush.bf16.msra.mxu0 %v1360
    %1891 = vmatmul.bf16.gmra.mxu0 %v475
    %v1892 = vpop.f32.mrf.mxu0
    %v1893 = vadd.f32 %v1880, %v1892
    %v1894 = vpop.f32.mrf.mxu0
    %1895 = vdwg.mxu0
    %1896 = vmatpush.bf16.msra.mxu0 0
    %1897 = vmatpush.bf16.msra.mxu0 0
    %1898 = vmatpush.bf16.msra.mxu0 0
    %1899 = vmatpush.bf16.msra.mxu0 0
    %1900 = vmatpush.bf16.msra.mxu0 0
    %1901 = vmatpush.bf16.msra.mxu0 0
    %1902 = vmatpush.bf16.msra.mxu0 0
    %1903 = vmatpush.bf16.msra.mxu0 %v1416
    %1904 = vmatmul.bf16.gmra.mxu0 %v1595
    %v1905 = vpop.f32.mrf.mxu0
    %v1906 = vadd.f32 %v1893, %v1905
    %v1907 = vpop.f32.mrf.mxu0
    %1908 = vdwg.mxu0
    %1909 = vmatpush.bf16.msra.mxu0 %v1298
    %1910 = vmatpush.bf16.msra.mxu0 %v1291
    %1911 = vmatpush.bf16.msra.mxu0 %v1284
    %1912 = vmatpush.bf16.msra.mxu0 %v1277
    %1913 = vmatpush.bf16.msra.mxu0 %v1270
    %1914 = vmatpush.bf16.msra.mxu0 %v1263
    %1915 = vmatpush.bf16.msra.mxu0 %v1256
    %1916 = vmatpush.bf16.msra.mxu0 %v1249
    %1917 = vmatmul.bf16.gmra.mxu0 %v473
    %v1918 = vpop.f32.mrf.mxu0
    %v1919 = vadd.f32 %v685, %v1918
    %v1920 = vpop.f32.mrf.mxu0
    %1921 = vdwg.mxu0
    %1922 = vmatpush.bf16.msra.mxu0 %v1354
    %1923 = vmatpush.bf16.msra.mxu0 %v1347
    %1924 = vmatpush.bf16.msra.mxu0 %v1340
    %1925 = vmatpush.bf16.msra.mxu0 %v1333
    %1926 = vmatpush.bf16.msra.mxu0 %v1326
    %1927 = vmatpush.bf16.msra.mxu0 %v1319
    %1928 = vmatpush.bf16.msra.mxu0 %v1312
    %1929 = vmatpush.bf16.msra.mxu0 %v1305
    %1930 = vmatmul.bf16.gmra.mxu0 %v474
    %v1931 = vpop.f32.mrf.mxu0
    %v1932 = vadd.f32 %v1919, %v1931
    %v1933 = vpop.f32.mrf.mxu0
    %1934 = vdwg.mxu0
    %1935 = vmatpush.bf16.msra.mxu0 %v1410
    %1936 = vmatpush.bf16.msra.mxu0 %v1403
    %1937 = vmatpush.bf16.msra.mxu0 %v1396
    %1938 = vmatpush.bf16.msra.mxu0 %v1389
    %1939 = vmatpush.bf16.msra.mxu0 %v1382
    %1940 = vmatpush.bf16.msra.mxu0 %v1375
    %1941 = vmatpush.bf16.msra.mxu0 %v1368
    %1942 = vmatpush.bf16.msra.mxu0 %v1361
    %1943 = vmatmul.bf16.gmra.mxu0 %v475
    %v1944 = vpop.f32.mrf.mxu0
    %v1945 = vadd.f32 %v1932, %v1944
    %v1946 = vpop.f32.mrf.mxu0
    %1947 = vdwg.mxu0
    %1948 = vmatpush.bf16.msra.mxu0 0
    %1949 = vmatpush.bf16.msra.mxu0 0
    %1950 = vmatpush.bf16.msra.mxu0 0
    %1951 = vmatpush.bf16.msra.mxu0 0
    %1952 = vmatpush.bf16.msra.mxu0 0
    %1953 = vmatpush.bf16.msra.mxu0 0
    %1954 = vmatpush.bf16.msra.mxu0 0
    %1955 = vmatpush.bf16.msra.mxu0 %v1417
    %1956 = vmatmul.bf16.gmra.mxu0 %v1595
    %v1957 = vpop.f32.mrf.mxu0
    %v1958 = vadd.f32 %v1945, %v1957
    %v1959 = vpop.f32.mrf.mxu0
    %1960 = vdwg.mxu0
    %1961 = vst [vmem:[#allocation8] sm:$0xff] %v1646
    %1962 = vst [vmem:[#allocation8 + $0x8] sm:$0xff] %v1698
    %1963 = vst [vmem:[#allocation8 + $0x10] sm:$0xff] %v1750
    %1964 = vst [vmem:[#allocation8 + $0x18] sm:$0xff] %v1802
    %1965 = vst [vmem:[#allocation8 + $0x20] sm:$0xff] %v1854
    %1966 = vst [vmem:[#allocation8 + $0x28] sm:$0xff] %v1906
    %1967 = vst.msk [vmem:[#allocation8 + $0x30] sm:$0xff] %vm1593, %v1958
    // Predicated region
    $region34: #{decoder2_forward.1} parent=1 // pred_check
      _
    $region35: #{decoder2_forward.1} parent=1 // pred_check_branch
      %1969 = sbr.rel (0) target = $region37
    $region36: #{decoder2_forward.1} parent=1 // pred_region
      %1971 = vsyncadd [#allocation4], 0
      %s1973 = sshll.u32 [#allocation8], 4
      %s1974 = int_to_ptr.vmem [resolvable:$true] %s1973
      %s1975 = sshll.u32 %s5, 4
      %s1976 = int_to_ptr.hbm [resolvable:$true] %s1975
      %1978 = dma.vmem_to_hbm [thread:$0]  %s1974, 896, %s1976, [#allocation4]
    $region37: #{decoder2_forward.1} parent=1 // pred_fallthru
      _
    // Predicated region
    $region38: #{decoder2_forward.1} parent=1 // pred_check
      _
    $region39: #{decoder2_forward.1} parent=1 // pred_check_branch
      %1980 = sbr.rel (0) target = $region41
    $region40: #{decoder2_forward.1} parent=1 // pred_region
      %1982 = dma.done [#allocation4], 896
    $region41: #{decoder2_forward.1} parent=1 // pred_fallthru
      _
    %1983 = vsyncpa [#allocation3], 1
    %1984 = vsyncpa [#allocation6], 1
    %1985 = vsyncpa [#allocation4], 1

</llo_original>
